<compile_context>
chip_gen: v5e
topology: v5e:2x2
jax: 0.10.0
libtpu: 0.0.40
codegen_flags: <defaults>
</compile_context>

<pallas_src>
import functools

import jax
import jax.numpy as jnp
from jax import lax
from jax.experimental import pallas as pl
from jax.experimental.pallas import tpu as pltpu


_LANES = 128  # lane-dense output width; holds both 2*C (table cols) and C+1 (logits)


def _codebook_head2_kernel(ci_ref, qf_ref, wt_ref, out_ref, *, num_classes):
    """Kernel body.

    ci_ref  : [R, 1]   int32 class index per (flattened) query row
    qf_ref  : [R, D]   f32 flattened (batch*query) features
    wt_ref  : [D, 128] f32 transposed embedding table, lane-padded;
                       columns 0..C-1 = class rows, C..2C-1 = background rows
    out_ref : [R, 128] f32 lane-dense logits (valid columns 0..C)
    """
    # One MXU matmul gives every <query, embedding> similarity at once.
    s = jnp.dot(qf_ref[...], wt_ref[...],
                preferred_element_type=jnp.float32)               # (R, 128)

    rows, lanes = out_ref.shape
    col = lax.broadcasted_iota(jnp.int32, (rows, lanes), 1)       # (R, 128)
    ci = ci_ref[...]                                              # (R, 1)

    # One-hot masks rebuilt in-kernel (idle VALU slots) instead of DMA'd in.
    cls_mask = col == ci                                          # class scatter lane
    bg_mask = col == (ci + num_classes)                           # bg source lane
    bg_col = col == num_classes                                   # bg output lane

    # Per-row background similarity: pick column C + ci[row] of s.
    bg_sim = jnp.sum(jnp.where(bg_mask, s, 0.0), axis=-1, keepdims=True)  # (R, 1)

    # Fused select: class lane keeps its own similarity (already in the right
    # lane), the background lane gets bg_sim, everything else is -inf.
    neg_inf = jnp.float32(-jnp.inf)
    out_ref[...] = jnp.where(cls_mask, s, jnp.where(bg_col, bg_sim, neg_inf))


def codebook_contrastive_head2(query_features, class_embeddings_weight,
                               class_indices, num_classes, *, row_block=None):
    """JAX wrapper reproducing CodebookContrastiveHead2.forward.

    query_features          : [B, Q, D] float32 (Q == num_classes * queries_per_class)
    class_embeddings_weight : [2 * num_classes, D] float32
    class_indices           : [Q] int32 (arange.repeat_interleave pattern)
    num_classes             : python int
    row_block               : optional python int; if set and < B*Q, tiles the
                              flattened rows with a ("parallel",) grid (v7x /
                              large-batch path).  None => whole problem in VMEM.
    returns                 : [B, Q, num_classes + 1] float32

    Call this inside jax.jit so the static preprocessing (table transpose/pad,
    index tiling) and the final narrow slice fuse with surrounding ops.
    """
    B, Q, D = query_features.shape
    C = int(num_classes)
    C1 = C + 1
    L = _LANES
    assert 2 * C <= L and C1 <= L, "num_classes too large for single-lane-tile layout"

    R = B * Q

    # --- lightweight glue (fuses/constant-folds under jit) ---
    qf_flat = query_features.reshape(R, D).astype(jnp.float32)       # no row pad copy
    wt = jnp.zeros((D, L), jnp.float32).at[:, :2 * C].set(
        class_embeddings_weight.astype(jnp.float32).T)
    ci_col = jnp.tile(class_indices.reshape(-1).astype(jnp.int32), B)[:, None]  # (R, 1)

    kernel = functools.partial(_codebook_head2_kernel, num_classes=C)

    if row_block is None or int(row_block) >= R:
        # Grid-less: whole problem (<1 MiB at default sizes) resident in VMEM.
        flops = 2 * R * D * L + 8 * R * L
        bytes_accessed = 4 * (R * D + D * L + R + R * L)
        out = pl.pallas_call(
            kernel,
            out_shape=jax.ShapeDtypeStruct((R, L), jnp.float32),
            in_specs=[pl.BlockSpec(memory_space=pltpu.MemorySpace.VMEM)] * 3,
            out_specs=pl.BlockSpec(memory_space=pltpu.MemorySpace.VMEM),
            cost_estimate=pl.CostEstimate(flops=flops, transcendentals=0,
                                          bytes_accessed=bytes_accessed),
        )(ci_col, qf_flat, wt)
        logits = out[:, :C1]
    else:
        # Row-blocked grid for large B*Q (keeps wt resident, streams qf/ci/out;
        # parallel rows let v7x's two TensorCores split the work).
        TR = ((int(row_block) + 7) // 8) * 8          # sublane-aligned row tile
        Rp = ((R + TR - 1) // TR) * TR
        qf_p = jnp.pad(qf_flat, ((0, Rp - R), (0, 0)))
        ci_p = jnp.pad(ci_col, ((0, Rp - R), (0, 0)))
        n_blocks = Rp // TR
        flops = 2 * Rp * D * L + 8 * Rp * L
        bytes_accessed = 4 * (Rp * D + n_blocks * D * L + Rp + Rp * L)
        out = pl.pallas_call(
            kernel,
            out_shape=jax.ShapeDtypeStruct((Rp, L), jnp.float32),
            grid=(n_blocks,),
            in_specs=[pl.BlockSpec((TR, 1), lambda i: (i, 0)),
                      pl.BlockSpec((TR, D), lambda i: (i, 0)),
                      pl.BlockSpec((D, L), lambda i: (0, 0))],
            out_specs=pl.BlockSpec((TR, L), lambda i: (i, 0)),
            compiler_params=pltpu.CompilerParams(
                dimension_semantics=("parallel",)),
            cost_estimate=pl.CostEstimate(flops=flops, transcendentals=0,
                                          bytes_accessed=bytes_accessed),
        )(ci_p, qf_p, wt)
        logits = out[:R, :C1]

    return logits.reshape(B, Q, C1)


def _reference(query_features, class_embeddings_weight, class_indices, num_classes):
    """Pure-JAX reference mirroring the PyTorch forward, for verification."""
    B, Q, D = query_features.shape
    C = num_classes
    ce = class_embeddings_weight[class_indices]           # (Q, D)
    be = class_embeddings_weight[class_indices + C]       # (Q, D)
    hp = jax.lax.Precision.HIGHEST
    class_sim = jnp.einsum('bqd,qd->bq', query_features, ce, precision=hp)
    bg_sim = jnp.einsum('bqd,qd->bq', query_features, be, precision=hp)
    logits = jnp.full((B, Q, C + 1), -jnp.inf, dtype=jnp.float32)
    logits = logits.at[:, jnp.arange(Q), class_indices].set(class_sim)
    logits = logits.at[:, :, C].set(bg_sim)
    return logits


if __name__ == "__main__":
    # Module hyperparameters (defaults from the PyTorch module).
    num_classes = 19
    queries_per_class = 5
    embedding_dim = 256
    batch_size = 2
    total_queries = num_classes * queries_per_class  # 95

    key = jax.random.PRNGKey(0)
    k_emb, k_q = jax.random.split(key)

    # nn.Embedding(num_classes * 2, embedding_dim), init normal(std=0.02)
    class_embeddings_weight = 0.02 * jax.random.normal(
        k_emb, (num_classes * 2, embedding_dim), dtype=jnp.float32)

    # class_indices = arange(num_classes).repeat_interleave(queries_per_class)
    class_indices = jnp.repeat(jnp.arange(num_classes, dtype=jnp.int32),
                               queries_per_class)                 # (95,)

    query_features = jax.random.normal(
        k_q, (batch_size, total_queries, embedding_dim), dtype=jnp.float32)

    ref = _reference(query_features, class_embeddings_weight,
                     class_indices, num_classes)
    finite_mask = jnp.isfinite(ref)

    def check(logits):
        assert logits.shape == (batch_size, total_queries, num_classes + 1)
        assert bool(jnp.all(jnp.isfinite(logits) == finite_mask))
        diff = float(jnp.max(jnp.abs(jnp.where(finite_mask, logits - ref, 0.0))))
        # Tolerance accounts for MXU f32 matmul pass differences vs the
        # HIGHEST-precision XLA reference; a semantic bug would be off by ~O(1).
        assert diff < 1e-3, f"max diff {diff}"

    # Grid-less path (default; whole problem resident in VMEM), fully jitted so
    # static prep and the output slice fuse.
    fwd = jax.jit(functools.partial(codebook_contrastive_head2,
                                    num_classes=num_classes))
    logits = jax.block_until_ready(fwd(query_features, class_embeddings_weight,
                                       class_indices))
    check(logits)

    # Row-blocked grid path (the large-B*Q / v7x scaling path) exercised at a
    # small row tile so both code paths are validated on small shapes.
    fwd_grid = jax.jit(functools.partial(codebook_contrastive_head2,
                                         num_classes=num_classes, row_block=64))
    logits_grid = jax.block_until_ready(fwd_grid(query_features,
                                                 class_embeddings_weight,
                                                 class_indices))
    check(logits_grid)

    print("KERNEL_OK")
</pallas_src>

<mosaic_0001>
module attributes {stable_mosaic.version = 11 : i64} {
  func.func @_codebook_head2_kernel(%arg0: memref<190x1xi32, #tpu.memory_space<vmem>>, %arg1: memref<190x256xf32, #tpu.memory_space<vmem>>, %arg2: memref<256x128xf32, #tpu.memory_space<vmem>>, %arg3: memref<190x128xf32, #tpu.memory_space<vmem>>) attributes {dimension_semantics = [], scalar_prefetch = 0 : i64, scratch_operands = 0 : i64, tpu.core_type = #tpu.core_type<tc>} {
    %c0 = arith.constant 0 : index
    %c0_0 = arith.constant 0 : index
    %0 = vector.load %arg1[%c0, %c0_0] : memref<190x256xf32, #tpu.memory_space<vmem>>, vector<190x256xf32>
    %c0_1 = arith.constant 0 : index
    %c0_2 = arith.constant 0 : index
    %1 = vector.load %arg2[%c0_1, %c0_2] : memref<256x128xf32, #tpu.memory_space<vmem>>, vector<256x128xf32>
    %cst = arith.constant dense<0.000000e+00> : vector<190x128xf32>
    %2 = tpu.matmul %0, %1, %cst {dimension_numbers = #tpu.dot_dimension_numbers<[1], [0], [0], [1], [0, 0, 1, 1], [], []>} : vector<190x256xf32>, vector<256x128xf32>, vector<190x128xf32> -> vector<190x128xf32>
    %3 = tpu.iota {dimensions = array<i32: 1>} : vector<190x128xi32>
    %c0_3 = arith.constant 0 : index
    %c0_4 = arith.constant 0 : index
    %4 = vector.load %arg0[%c0_3, %c0_4] : memref<190x1xi32, #tpu.memory_space<vmem>>, vector<190x1xi32>
    %5 = vector.broadcast %4 : vector<190x1xi32> to vector<190x128xi32>
    %6 = arith.cmpi eq, %3, %5 : vector<190x128xi32>
    %c19_i32 = arith.constant 19 : i32
    %7 = vector.broadcast %c19_i32 : i32 to vector<190x1xi32>
    %8 = arith.addi %4, %7 : vector<190x1xi32>
    %9 = vector.broadcast %8 : vector<190x1xi32> to vector<190x128xi32>
    %10 = arith.cmpi eq, %3, %9 : vector<190x128xi32>
    %c19_i32_5 = arith.constant 19 : i32
    %11 = vector.broadcast %c19_i32_5 : i32 to vector<190x128xi32>
    %12 = arith.cmpi eq, %3, %11 : vector<190x128xi32>
    %cst_6 = arith.constant 0.000000e+00 : f32
    %13 = vector.broadcast %cst_6 : f32 to vector<190x128xf32>
    %14 = arith.select %10, %2, %13 : vector<190x128xi1>, vector<190x128xf32>
    %cst_7 = arith.constant dense<0.000000e+00> : vector<190xf32>
    %15 = vector.multi_reduction <add>, %14, %cst_7 [1] : vector<190x128xf32> to vector<190xf32>
    %16 = vector.shape_cast %15 : vector<190xf32> to vector<190x1xf32>
    %cst_8 = arith.constant 0xFF800000 : f32
    %17 = vector.shape_cast %16 : vector<190x1xf32> to vector<190x1xf32>
    %18 = vector.broadcast %17 : vector<190x1xf32> to vector<190x128xf32>
    %19 = vector.broadcast %cst_8 : f32 to vector<190x128xf32>
    %20 = arith.select %12, %18, %19 : vector<190x128xi1>, vector<190x128xf32>
    %21 = arith.select %6, %2, %20 : vector<190x128xi1>, vector<190x128xf32>
    %c0_9 = arith.constant 0 : index
    %c0_10 = arith.constant 0 : index
    %22 = vector.load %arg3[%c0_9, %c0_10] : memref<190x128xf32, #tpu.memory_space<vmem>>, vector<190x128xf32>
    tpu.vector_store %arg3[%c0_9, %c0_10], %21 {strides = array<i32>} : memref<190x128xf32, #tpu.memory_space<vmem>>, vector<190x128xf32>,
    return
  }
}

</mosaic_0001>

<llo_original>
// kernel: tile.8
$region0: #{tile.8}
  #allocation0 [shape = 's32[1]{0}', space=sflag, size = 0x4, scoped, tag = 'scoped memory for tile.8']
  %s0 = inlined_call_operand.vmem [shape: s32[95], index: 0, kind: input, shape index: {}]
  %s1 = inlined_call_operand.vmem [shape: s32[2,95], index: 1, kind: output, shape index: {}]
  // Predicated region
  $region2: #{tile.8} parent=0 // pred_check
    _
  $region3: #{tile.8} parent=0 // pred_check_branch
    %3 = sbr.rel (0) target = $region5
  $region4: #{tile.8} parent=0 // pred_region
    _
  $region5: #{tile.8} parent=0 // pred_fallthru
    _
  %v4 = vld [vmem:[%s0] ss:$0 sm:$0xff]
  %5 = vst [vmem:[%s1] sm:$0x3] %v4

// kernel: tile.0
$region0: #{tile.0}
  %s0 = inlined_call_operand.vmem [shape: s32[2,95], index: 0, kind: input, shape index: {}]
  %s1 = inlined_call_operand.vmem [shape: s32[190,1], index: 1, kind: output, shape index: {}]
  $region1: #{tile.0} parent=0
    #allocation0 [shape = 'u8[4096]{0}', space=vmem, size = 0x1000, scoped, tag = 'scoped mem for input reshape']
    %s3 = ssub.s32 4, 1
    %v4 = vld [vmem:[%s0] sm:%s3]
    %5 = vst [vmem:[#allocation0] sm:%s3] %v4
    %v6 = vld [vmem:[#allocation0] sm:$0x3]
    %vm7 = vcmask 7168
    %8 = vst.msk [vmem:[%s1] ss:$95 sm:$0x3] %vm7, %v6
    %s9 = scalar_lea.vmem [#allocation0], 1
    %s10 = smov 3
    %v11 = vld [vmem:[%s9] ss:$-1 sm:%s10]
    %12 = vrot.lane.b32.xlu0 %v11, 127
    %v13 = vpop.permute.xlu0 %12
    %vm14 = vcmask 7168
    %s15 = scalar_lea.vmem %s1, 96
    %16 = vst.msk [vmem:[%s15] ss:$-95 sm:$0x3] %vm14, %v13
    %s17 = scalar_lea.vmem [#allocation0], 1
    %s18 = smov 3
    %v19 = vld [vmem:[%s17] ss:$-1 sm:%s18]
    %20 = vrot.lane.b32.xlu0 %v19, 126
    %v21 = vpop.permute.xlu0 %20
    %vm22 = vcmask 7168
    %s23 = scalar_lea.vmem %s1, 97
    %24 = vst.msk [vmem:[%s23] ss:$-95 sm:$0x3] %vm22, %v21
    %s25 = scalar_lea.vmem [#allocation0], 1
    %s26 = smov 3
    %v27 = vld [vmem:[%s25] ss:$-1 sm:%s26]
    %28 = vrot.lane.b32.xlu0 %v27, 125
    %v29 = vpop.permute.xlu0 %28
    %vm30 = vcmask 7168
    %s31 = scalar_lea.vmem %s1, 98
    %32 = vst.msk [vmem:[%s31] ss:$-95 sm:$0x3] %vm30, %v29
    %s33 = scalar_lea.vmem [#allocation0], 1
    %s34 = smov 3
    %v35 = vld [vmem:[%s33] ss:$-1 sm:%s34]
    %36 = vrot.lane.b32.xlu0 %v35, 124
    %v37 = vpop.permute.xlu0 %36
    %vm38 = vcmask 7168
    %s39 = scalar_lea.vmem %s1, 99
    %40 = vst.msk [vmem:[%s39] ss:$-95 sm:$0x3] %vm38, %v37
    %s41 = scalar_lea.vmem [#allocation0], 1
    %s42 = smov 3
    %v43 = vld [vmem:[%s41] ss:$-1 sm:%s42]
    %44 = vrot.lane.b32.xlu0 %v43, 123
    %v45 = vpop.permute.xlu0 %44
    %vm46 = vcmask 7168
    %s47 = scalar_lea.vmem %s1, 100
    %48 = vst.msk [vmem:[%s47] ss:$-95 sm:$0x3] %vm46, %v45
    %s49 = scalar_lea.vmem [#allocation0], 1
    %s50 = smov 3
    %v51 = vld [vmem:[%s49] ss:$-1 sm:%s50]
    %52 = vrot.lane.b32.xlu0 %v51, 122
    %v53 = vpop.permute.xlu0 %52
    %vm54 = vcmask 7168
    %s55 = scalar_lea.vmem %s1, 101
    %56 = vst.msk [vmem:[%s55] ss:$-95 sm:$0x3] %vm54, %v53
    %s57 = scalar_lea.vmem [#allocation0], 1
    %s58 = smov 3
    %v59 = vld [vmem:[%s57] ss:$-1 sm:%s58]
    %60 = vrot.lane.b32.xlu0 %v59, 121
    %v61 = vpop.permute.xlu0 %60
    %vm62 = vcmask 7168
    %s63 = scalar_lea.vmem %s1, 102
    %64 = vst.msk [vmem:[%s63] ss:$-95 sm:$0x3] %vm62, %v61
    %s65 = scalar_lea.vmem [#allocation0], 1
    %s66 = smov 3
    %v67 = vld [vmem:[%s65] ss:$-1 sm:%s66]
    %68 = vrot.lane.b32.xlu0 %v67, 120
    %v69 = vpop.permute.xlu0 %68
    %vm70 = vcmask 7168
    %s71 = scalar_lea.vmem %s1, 103
    %72 = vst.msk [vmem:[%s71] ss:$-95 sm:$0x3] %vm70, %v69
    %s73 = scalar_lea.vmem [#allocation0], 1
    %s74 = smov 3
    %v75 = vld [vmem:[%s73] ss:$-1 sm:%s74]
    %76 = vrot.lane.b32.xlu0 %v75, 119
    %v77 = vpop.permute.xlu0 %76
    %vm78 = vcmask 7168
    %s79 = scalar_lea.vmem %s1, 104
    %80 = vst.msk [vmem:[%s79] ss:$-95 sm:$0x3] %vm78, %v77
    %s81 = scalar_lea.vmem [#allocation0], 1
    %s82 = smov 3
    %v83 = vld [vmem:[%s81] ss:$-1 sm:%s82]
    %84 = vrot.lane.b32.xlu0 %v83, 118
    %v85 = vpop.permute.xlu0 %84
    %vm86 = vcmask 7168
    %s87 = scalar_lea.vmem %s1, 105
    %88 = vst.msk [vmem:[%s87] ss:$-95 sm:$0x3] %vm86, %v85
    %s89 = scalar_lea.vmem [#allocation0], 1
    %s90 = smov 3
    %v91 = vld [vmem:[%s89] ss:$-1 sm:%s90]
    %92 = vrot.lane.b32.xlu0 %v91, 117
    %v93 = vpop.permute.xlu0 %92
    %vm94 = vcmask 7168
    %s95 = scalar_lea.vmem %s1, 106
    %96 = vst.msk [vmem:[%s95] ss:$-95 sm:$0x3] %vm94, %v93
    %s97 = scalar_lea.vmem [#allocation0], 1
    %s98 = smov 3
    %v99 = vld [vmem:[%s97] ss:$-1 sm:%s98]
    %100 = vrot.lane.b32.xlu0 %v99, 116
    %v101 = vpop.permute.xlu0 %100
    %vm102 = vcmask 7168
    %s103 = scalar_lea.vmem %s1, 107
    %104 = vst.msk [vmem:[%s103] ss:$-95 sm:$0x3] %vm102, %v101
    %s105 = scalar_lea.vmem [#allocation0], 1
    %s106 = smov 3
    %v107 = vld [vmem:[%s105] ss:$-1 sm:%s106]
    %108 = vrot.lane.b32.xlu0 %v107, 115
    %v109 = vpop.permute.xlu0 %108
    %vm110 = vcmask 7168
    %s111 = scalar_lea.vmem %s1, 108
    %112 = vst.msk [vmem:[%s111] ss:$-95 sm:$0x3] %vm110, %v109
    %s113 = scalar_lea.vmem [#allocation0], 1
    %s114 = smov 3
    %v115 = vld [vmem:[%s113] ss:$-1 sm:%s114]
    %116 = vrot.lane.b32.xlu0 %v115, 114
    %v117 = vpop.permute.xlu0 %116
    %vm118 = vcmask 7168
    %s119 = scalar_lea.vmem %s1, 109
    %120 = vst.msk [vmem:[%s119] ss:$-95 sm:$0x3] %vm118, %v117
    %s121 = scalar_lea.vmem [#allocation0], 1
    %s122 = smov 3
    %v123 = vld [vmem:[%s121] ss:$-1 sm:%s122]
    %124 = vrot.lane.b32.xlu0 %v123, 113
    %v125 = vpop.permute.xlu0 %124
    %vm126 = vcmask 7168
    %s127 = scalar_lea.vmem %s1, 110
    %128 = vst.msk [vmem:[%s127] ss:$-95 sm:$0x3] %vm126, %v125
    %s129 = scalar_lea.vmem [#allocation0], 1
    %s130 = smov 3
    %v131 = vld [vmem:[%s129] ss:$-1 sm:%s130]
    %132 = vrot.lane.b32.xlu0 %v131, 112
    %v133 = vpop.permute.xlu0 %132
    %vm134 = vcmask 7168
    %s135 = scalar_lea.vmem %s1, 111
    %136 = vst.msk [vmem:[%s135] ss:$-95 sm:$0x3] %vm134, %v133
    %s137 = scalar_lea.vmem [#allocation0], 1
    %s138 = smov 3
    %v139 = vld [vmem:[%s137] ss:$-1 sm:%s138]
    %140 = vrot.lane.b32.xlu0 %v139, 111
    %v141 = vpop.permute.xlu0 %140
    %vm142 = vcmask 7168
    %s143 = scalar_lea.vmem %s1, 112
    %144 = vst.msk [vmem:[%s143] ss:$-95 sm:$0x3] %vm142, %v141
    %s145 = scalar_lea.vmem [#allocation0], 1
    %s146 = smov 3
    %v147 = vld [vmem:[%s145] ss:$-1 sm:%s146]
    %148 = vrot.lane.b32.xlu0 %v147, 110
    %v149 = vpop.permute.xlu0 %148
    %vm150 = vcmask 7168
    %s151 = scalar_lea.vmem %s1, 113
    %152 = vst.msk [vmem:[%s151] ss:$-95 sm:$0x3] %vm150, %v149
    %s153 = scalar_lea.vmem [#allocation0], 1
    %s154 = smov 3
    %v155 = vld [vmem:[%s153] ss:$-1 sm:%s154]
    %156 = vrot.lane.b32.xlu0 %v155, 109
    %v157 = vpop.permute.xlu0 %156
    %vm158 = vcmask 7168
    %s159 = scalar_lea.vmem %s1, 114
    %160 = vst.msk [vmem:[%s159] ss:$-95 sm:$0x3] %vm158, %v157
    %s161 = scalar_lea.vmem [#allocation0], 1
    %s162 = smov 3
    %v163 = vld [vmem:[%s161] ss:$-1 sm:%s162]
    %164 = vrot.lane.b32.xlu0 %v163, 108
    %v165 = vpop.permute.xlu0 %164
    %vm166 = vcmask 7168
    %s167 = scalar_lea.vmem %s1, 115
    %168 = vst.msk [vmem:[%s167] ss:$-95 sm:$0x3] %vm166, %v165
    %s169 = scalar_lea.vmem [#allocation0], 1
    %s170 = smov 3
    %v171 = vld [vmem:[%s169] ss:$-1 sm:%s170]
    %172 = vrot.lane.b32.xlu0 %v171, 107
    %v173 = vpop.permute.xlu0 %172
    %vm174 = vcmask 7168
    %s175 = scalar_lea.vmem %s1, 116
    %176 = vst.msk [vmem:[%s175] ss:$-95 sm:$0x3] %vm174, %v173
    %s177 = scalar_lea.vmem [#allocation0], 1
    %s178 = smov 3
    %v179 = vld [vmem:[%s177] ss:$-1 sm:%s178]
    %180 = vrot.lane.b32.xlu0 %v179, 106
    %v181 = vpop.permute.xlu0 %180
    %vm182 = vcmask 7168
    %s183 = scalar_lea.vmem %s1, 117
    %184 = vst.msk [vmem:[%s183] ss:$-95 sm:$0x3] %vm182, %v181
    %s185 = scalar_lea.vmem [#allocation0], 1
    %s186 = smov 3
    %v187 = vld [vmem:[%s185] ss:$-1 sm:%s186]
    %188 = vrot.lane.b32.xlu0 %v187, 105
    %v189 = vpop.permute.xlu0 %188
    %vm190 = vcmask 7168
    %s191 = scalar_lea.vmem %s1, 118
    %192 = vst.msk [vmem:[%s191] ss:$-95 sm:$0x3] %vm190, %v189
    %s193 = scalar_lea.vmem [#allocation0], 1
    %s194 = smov 3
    %v195 = vld [vmem:[%s193] ss:$-1 sm:%s194]
    %196 = vrot.lane.b32.xlu0 %v195, 104
    %v197 = vpop.permute.xlu0 %196
    %vm198 = vcmask 7168
    %s199 = scalar_lea.vmem %s1, 119
    %200 = vst.msk [vmem:[%s199] ss:$-95 sm:$0x3] %vm198, %v197
    %s201 = scalar_lea.vmem [#allocation0], 1
    %s202 = smov 3
    %v203 = vld [vmem:[%s201] ss:$-1 sm:%s202]
    %204 = vrot.lane.b32.xlu0 %v203, 103
    %v205 = vpop.permute.xlu0 %204
    %vm206 = vcmask 7168
    %s207 = scalar_lea.vmem %s1, 120
    %208 = vst.msk [vmem:[%s207] ss:$-95 sm:$0x3] %vm206, %v205
    %s209 = scalar_lea.vmem [#allocation0], 1
    %s210 = smov 3
    %v211 = vld [vmem:[%s209] ss:$-1 sm:%s210]
    %212 = vrot.lane.b32.xlu0 %v211, 102
    %v213 = vpop.permute.xlu0 %212
    %vm214 = vcmask 7168
    %s215 = scalar_lea.vmem %s1, 121
    %216 = vst.msk [vmem:[%s215] ss:$-95 sm:$0x3] %vm214, %v213
    %s217 = scalar_lea.vmem [#allocation0], 1
    %s218 = smov 3
    %v219 = vld [vmem:[%s217] ss:$-1 sm:%s218]
    %220 = vrot.lane.b32.xlu0 %v219, 101
    %v221 = vpop.permute.xlu0 %220
    %vm222 = vcmask 7168
    %s223 = scalar_lea.vmem %s1, 122
    %224 = vst.msk [vmem:[%s223] ss:$-95 sm:$0x3] %vm222, %v221
    %s225 = scalar_lea.vmem [#allocation0], 1
    %s226 = smov 3
    %v227 = vld [vmem:[%s225] ss:$-1 sm:%s226]
    %228 = vrot.lane.b32.xlu0 %v227, 100
    %v229 = vpop.permute.xlu0 %228
    %vm230 = vcmask 7168
    %s231 = scalar_lea.vmem %s1, 123
    %232 = vst.msk [vmem:[%s231] ss:$-95 sm:$0x3] %vm230, %v229
    %s233 = scalar_lea.vmem [#allocation0], 1
    %s234 = smov 3
    %v235 = vld [vmem:[%s233] ss:$-1 sm:%s234]
    %236 = vrot.lane.b32.xlu0 %v235, 99
    %v237 = vpop.permute.xlu0 %236
    %vm238 = vcmask 7168
    %s239 = scalar_lea.vmem %s1, 124
    %240 = vst.msk [vmem:[%s239] ss:$-95 sm:$0x3] %vm238, %v237
    %s241 = scalar_lea.vmem [#allocation0], 1
    %s242 = smov 3
    %v243 = vld [vmem:[%s241] ss:$-1 sm:%s242]
    %244 = vrot.lane.b32.xlu0 %v243, 98
    %v245 = vpop.permute.xlu0 %244
    %vm246 = vcmask 7168
    %s247 = scalar_lea.vmem %s1, 125
    %248 = vst.msk [vmem:[%s247] ss:$-95 sm:$0x3] %vm246, %v245
    %s249 = scalar_lea.vmem [#allocation0], 1
    %s250 = smov 3
    %v251 = vld [vmem:[%s249] ss:$-1 sm:%s250]
    %252 = vrot.lane.b32.xlu0 %v251, 97
    %v253 = vpop.permute.xlu0 %252
    %vm254 = vcmask 7168
    %s255 = scalar_lea.vmem %s1, 126
    %256 = vst.msk [vmem:[%s255] ss:$-95 sm:$0x3] %vm254, %v253
    %v257 = vld [vmem:[#allocation0] sm:$0x3]
    %258 = vrot.lane.b32.xlu0 %v257, 96
    %v259 = vpop.permute.xlu0 %258
    %vm260 = vcmask 7168
    %s261 = scalar_lea.vmem %s1, 32
    %262 = vst.msk [vmem:[%s261] ss:$95 sm:$0x3] %vm260, %v259
    %s263 = scalar_lea.vmem [#allocation0], 1
    %s264 = smov 3
    %v265 = vld [vmem:[%s263] ss:$-1 sm:%s264]
    %266 = vrot.lane.b32.xlu0 %v265, 95
    %v267 = vpop.permute.xlu0 %266
    %vm268 = vcmask 7168
    %s269 = scalar_lea.vmem %s1, 128
    %270 = vst.msk [vmem:[%s269] ss:$-95 sm:$0x3] %vm268, %v267
    %s271 = scalar_lea.vmem [#allocation0], 1
    %s272 = smov 3
    %v273 = vld [vmem:[%s271] ss:$-1 sm:%s272]
    %274 = vrot.lane.b32.xlu0 %v273, 94
    %v275 = vpop.permute.xlu0 %274
    %vm276 = vcmask 7168
    %s277 = scalar_lea.vmem %s1, 129
    %278 = vst.msk [vmem:[%s277] ss:$-95 sm:$0x3] %vm276, %v275
    %s279 = scalar_lea.vmem [#allocation0], 1
    %s280 = smov 3
    %v281 = vld [vmem:[%s279] ss:$-1 sm:%s280]
    %282 = vrot.lane.b32.xlu0 %v281, 93
    %v283 = vpop.permute.xlu0 %282
    %vm284 = vcmask 7168
    %s285 = scalar_lea.vmem %s1, 130
    %286 = vst.msk [vmem:[%s285] ss:$-95 sm:$0x3] %vm284, %v283
    %s287 = scalar_lea.vmem [#allocation0], 1
    %s288 = smov 3
    %v289 = vld [vmem:[%s287] ss:$-1 sm:%s288]
    %290 = vrot.lane.b32.xlu0 %v289, 92
    %v291 = vpop.permute.xlu0 %290
    %vm292 = vcmask 7168
    %s293 = scalar_lea.vmem %s1, 131
    %294 = vst.msk [vmem:[%s293] ss:$-95 sm:$0x3] %vm292, %v291
    %s295 = scalar_lea.vmem [#allocation0], 1
    %s296 = smov 3
    %v297 = vld [vmem:[%s295] ss:$-1 sm:%s296]
    %298 = vrot.lane.b32.xlu0 %v297, 91
    %v299 = vpop.permute.xlu0 %298
    %vm300 = vcmask 7168
    %s301 = scalar_lea.vmem %s1, 132
    %302 = vst.msk [vmem:[%s301] ss:$-95 sm:$0x3] %vm300, %v299
    %s303 = scalar_lea.vmem [#allocation0], 1
    %s304 = smov 3
    %v305 = vld [vmem:[%s303] ss:$-1 sm:%s304]
    %306 = vrot.lane.b32.xlu0 %v305, 90
    %v307 = vpop.permute.xlu0 %306
    %vm308 = vcmask 7168
    %s309 = scalar_lea.vmem %s1, 133
    %310 = vst.msk [vmem:[%s309] ss:$-95 sm:$0x3] %vm308, %v307
    %s311 = scalar_lea.vmem [#allocation0], 1
    %s312 = smov 3
    %v313 = vld [vmem:[%s311] ss:$-1 sm:%s312]
    %314 = vrot.lane.b32.xlu0 %v313, 89
    %v315 = vpop.permute.xlu0 %314
    %vm316 = vcmask 7168
    %s317 = scalar_lea.vmem %s1, 134
    %318 = vst.msk [vmem:[%s317] ss:$-95 sm:$0x3] %vm316, %v315
    %s319 = scalar_lea.vmem [#allocation0], 1
    %s320 = smov 3
    %v321 = vld [vmem:[%s319] ss:$-1 sm:%s320]
    %322 = vrot.lane.b32.xlu0 %v321, 88
    %v323 = vpop.permute.xlu0 %322
    %vm324 = vcmask 7168
    %s325 = scalar_lea.vmem %s1, 135
    %326 = vst.msk [vmem:[%s325] ss:$-95 sm:$0x3] %vm324, %v323
    %s327 = scalar_lea.vmem [#allocation0], 1
    %s328 = smov 3
    %v329 = vld [vmem:[%s327] ss:$-1 sm:%s328]
    %330 = vrot.lane.b32.xlu0 %v329, 87
    %v331 = vpop.permute.xlu0 %330
    %vm332 = vcmask 7168
    %s333 = scalar_lea.vmem %s1, 136
    %334 = vst.msk [vmem:[%s333] ss:$-95 sm:$0x3] %vm332, %v331
    %s335 = scalar_lea.vmem [#allocation0], 1
    %s336 = smov 3
    %v337 = vld [vmem:[%s335] ss:$-1 sm:%s336]
    %338 = vrot.lane.b32.xlu0 %v337, 86
    %v339 = vpop.permute.xlu0 %338
    %vm340 = vcmask 7168
    %s341 = scalar_lea.vmem %s1, 137
    %342 = vst.msk [vmem:[%s341] ss:$-95 sm:$0x3] %vm340, %v339
    %s343 = scalar_lea.vmem [#allocation0], 1
    %s344 = smov 3
    %v345 = vld [vmem:[%s343] ss:$-1 sm:%s344]
    %346 = vrot.lane.b32.xlu0 %v345, 85
    %v347 = vpop.permute.xlu0 %346
    %vm348 = vcmask 7168
    %s349 = scalar_lea.vmem %s1, 138
    %350 = vst.msk [vmem:[%s349] ss:$-95 sm:$0x3] %vm348, %v347
    %s351 = scalar_lea.vmem [#allocation0], 1
    %s352 = smov 3
    %v353 = vld [vmem:[%s351] ss:$-1 sm:%s352]
    %354 = vrot.lane.b32.xlu0 %v353, 84
    %v355 = vpop.permute.xlu0 %354
    %vm356 = vcmask 7168
    %s357 = scalar_lea.vmem %s1, 139
    %358 = vst.msk [vmem:[%s357] ss:$-95 sm:$0x3] %vm356, %v355
    %s359 = scalar_lea.vmem [#allocation0], 1
    %s360 = smov 3
    %v361 = vld [vmem:[%s359] ss:$-1 sm:%s360]
    %362 = vrot.lane.b32.xlu0 %v361, 83
    %v363 = vpop.permute.xlu0 %362
    %vm364 = vcmask 7168
    %s365 = scalar_lea.vmem %s1, 140
    %366 = vst.msk [vmem:[%s365] ss:$-95 sm:$0x3] %vm364, %v363
    %s367 = scalar_lea.vmem [#allocation0], 1
    %s368 = smov 3
    %v369 = vld [vmem:[%s367] ss:$-1 sm:%s368]
    %370 = vrot.lane.b32.xlu0 %v369, 82
    %v371 = vpop.permute.xlu0 %370
    %vm372 = vcmask 7168
    %s373 = scalar_lea.vmem %s1, 141
    %374 = vst.msk [vmem:[%s373] ss:$-95 sm:$0x3] %vm372, %v371
    %s375 = scalar_lea.vmem [#allocation0], 1
    %s376 = smov 3
    %v377 = vld [vmem:[%s375] ss:$-1 sm:%s376]
    %378 = vrot.lane.b32.xlu0 %v377, 81
    %v379 = vpop.permute.xlu0 %378
    %vm380 = vcmask 7168
    %s381 = scalar_lea.vmem %s1, 142
    %382 = vst.msk [vmem:[%s381] ss:$-95 sm:$0x3] %vm380, %v379
    %s383 = scalar_lea.vmem [#allocation0], 1
    %s384 = smov 3
    %v385 = vld [vmem:[%s383] ss:$-1 sm:%s384]
    %386 = vrot.lane.b32.xlu0 %v385, 80
    %v387 = vpop.permute.xlu0 %386
    %vm388 = vcmask 7168
    %s389 = scalar_lea.vmem %s1, 143
    %390 = vst.msk [vmem:[%s389] ss:$-95 sm:$0x3] %vm388, %v387
    %s391 = scalar_lea.vmem [#allocation0], 1
    %s392 = smov 3
    %v393 = vld [vmem:[%s391] ss:$-1 sm:%s392]
    %394 = vrot.lane.b32.xlu0 %v393, 79
    %v395 = vpop.permute.xlu0 %394
    %vm396 = vcmask 7168
    %s397 = scalar_lea.vmem %s1, 144
    %398 = vst.msk [vmem:[%s397] ss:$-95 sm:$0x3] %vm396, %v395
    %s399 = scalar_lea.vmem [#allocation0], 1
    %s400 = smov 3
    %v401 = vld [vmem:[%s399] ss:$-1 sm:%s400]
    %402 = vrot.lane.b32.xlu0 %v401, 78
    %v403 = vpop.permute.xlu0 %402
    %vm404 = vcmask 7168
    %s405 = scalar_lea.vmem %s1, 145
    %406 = vst.msk [vmem:[%s405] ss:$-95 sm:$0x3] %vm404, %v403
    %s407 = scalar_lea.vmem [#allocation0], 1
    %s408 = smov 3
    %v409 = vld [vmem:[%s407] ss:$-1 sm:%s408]
    %410 = vrot.lane.b32.xlu0 %v409, 77
    %v411 = vpop.permute.xlu0 %410
    %vm412 = vcmask 7168
    %s413 = scalar_lea.vmem %s1, 146
    %414 = vst.msk [vmem:[%s413] ss:$-95 sm:$0x3] %vm412, %v411
    %s415 = scalar_lea.vmem [#allocation0], 1
    %s416 = smov 3
    %v417 = vld [vmem:[%s415] ss:$-1 sm:%s416]
    %418 = vrot.lane.b32.xlu0 %v417, 76
    %v419 = vpop.permute.xlu0 %418
    %vm420 = vcmask 7168
    %s421 = scalar_lea.vmem %s1, 147
    %422 = vst.msk [vmem:[%s421] ss:$-95 sm:$0x3] %vm420, %v419
    %s423 = scalar_lea.vmem [#allocation0], 1
    %s424 = smov 3
    %v425 = vld [vmem:[%s423] ss:$-1 sm:%s424]
    %426 = vrot.lane.b32.xlu0 %v425, 75
    %v427 = vpop.permute.xlu0 %426
    %vm428 = vcmask 7168
    %s429 = scalar_lea.vmem %s1, 148
    %430 = vst.msk [vmem:[%s429] ss:$-95 sm:$0x3] %vm428, %v427
    %s431 = scalar_lea.vmem [#allocation0], 1
    %s432 = smov 3
    %v433 = vld [vmem:[%s431] ss:$-1 sm:%s432]
    %434 = vrot.lane.b32.xlu0 %v433, 74
    %v435 = vpop.permute.xlu0 %434
    %vm436 = vcmask 7168
    %s437 = scalar_lea.vmem %s1, 149
    %438 = vst.msk [vmem:[%s437] ss:$-95 sm:$0x3] %vm436, %v435
    %s439 = scalar_lea.vmem [#allocation0], 1
    %s440 = smov 3
    %v441 = vld [vmem:[%s439] ss:$-1 sm:%s440]
    %442 = vrot.lane.b32.xlu0 %v441, 73
    %v443 = vpop.permute.xlu0 %442
    %vm444 = vcmask 7168
    %s445 = scalar_lea.vmem %s1, 150
    %446 = vst.msk [vmem:[%s445] ss:$-95 sm:$0x3] %vm444, %v443
    %s447 = scalar_lea.vmem [#allocation0], 1
    %s448 = smov 3
    %v449 = vld [vmem:[%s447] ss:$-1 sm:%s448]
    %450 = vrot.lane.b32.xlu0 %v449, 72
    %v451 = vpop.permute.xlu0 %450
    %vm452 = vcmask 7168
    %s453 = scalar_lea.vmem %s1, 151
    %454 = vst.msk [vmem:[%s453] ss:$-95 sm:$0x3] %vm452, %v451
    %s455 = scalar_lea.vmem [#allocation0], 1
    %s456 = smov 3
    %v457 = vld [vmem:[%s455] ss:$-1 sm:%s456]
    %458 = vrot.lane.b32.xlu0 %v457, 71
    %v459 = vpop.permute.xlu0 %458
    %vm460 = vcmask 7168
    %s461 = scalar_lea.vmem %s1, 152
    %462 = vst.msk [vmem:[%s461] ss:$-95 sm:$0x3] %vm460, %v459
    %s463 = scalar_lea.vmem [#allocation0], 1
    %s464 = smov 3
    %v465 = vld [vmem:[%s463] ss:$-1 sm:%s464]
    %466 = vrot.lane.b32.xlu0 %v465, 70
    %v467 = vpop.permute.xlu0 %466
    %vm468 = vcmask 7168
    %s469 = scalar_lea.vmem %s1, 153
    %470 = vst.msk [vmem:[%s469] ss:$-95 sm:$0x3] %vm468, %v467
    %s471 = scalar_lea.vmem [#allocation0], 1
    %s472 = smov 3
    %v473 = vld [vmem:[%s471] ss:$-1 sm:%s472]
    %474 = vrot.lane.b32.xlu0 %v473, 69
    %v475 = vpop.permute.xlu0 %474
    %vm476 = vcmask 7168
    %s477 = scalar_lea.vmem %s1, 154
    %478 = vst.msk [vmem:[%s477] ss:$-95 sm:$0x3] %vm476, %v475
    %s479 = scalar_lea.vmem [#allocation0], 1
    %s480 = smov 3
    %v481 = vld [vmem:[%s479] ss:$-1 sm:%s480]
    %482 = vrot.lane.b32.xlu0 %v481, 68
    %v483 = vpop.permute.xlu0 %482
    %vm484 = vcmask 7168
    %s485 = scalar_lea.vmem %s1, 155
    %486 = vst.msk [vmem:[%s485] ss:$-95 sm:$0x3] %vm484, %v483
    %s487 = scalar_lea.vmem [#allocation0], 1
    %s488 = smov 3
    %v489 = vld [vmem:[%s487] ss:$-1 sm:%s488]
    %490 = vrot.lane.b32.xlu0 %v489, 67
    %v491 = vpop.permute.xlu0 %490
    %vm492 = vcmask 7168
    %s493 = scalar_lea.vmem %s1, 156
    %494 = vst.msk [vmem:[%s493] ss:$-95 sm:$0x3] %vm492, %v491
    %s495 = scalar_lea.vmem [#allocation0], 1
    %s496 = smov 3
    %v497 = vld [vmem:[%s495] ss:$-1 sm:%s496]
    %498 = vrot.lane.b32.xlu0 %v497, 66
    %v499 = vpop.permute.xlu0 %498
    %vm500 = vcmask 7168
    %s501 = scalar_lea.vmem %s1, 157
    %502 = vst.msk [vmem:[%s501] ss:$-95 sm:$0x3] %vm500, %v499
    %s503 = scalar_lea.vmem [#allocation0], 1
    %s504 = smov 3
    %v505 = vld [vmem:[%s503] ss:$-1 sm:%s504]
    %506 = vrot.lane.b32.xlu0 %v505, 65
    %v507 = vpop.permute.xlu0 %506
    %vm508 = vcmask 7168
    %s509 = scalar_lea.vmem %s1, 158
    %510 = vst.msk [vmem:[%s509] ss:$-95 sm:$0x3] %vm508, %v507
    %v511 = vld [vmem:[#allocation0] sm:$0x3]
    %512 = vrot.lane.b32.xlu0 %v511, 64
    %v513 = vpop.permute.xlu0 %512
    %vm514 = vcmask 7168
    %s515 = scalar_lea.vmem %s1, 64
    %516 = vst.msk [vmem:[%s515] ss:$95 sm:$0x3] %vm514, %v513
    %s517 = scalar_lea.vmem [#allocation0], 1
    %s518 = smov 3
    %v519 = vld [vmem:[%s517] ss:$-1 sm:%s518]
    %520 = vrot.lane.b32.xlu0 %v519, 63
    %v521 = vpop.permute.xlu0 %520
    %vm522 = vcmask 7168
    %s523 = scalar_lea.vmem %s1, 160
    %524 = vst.msk [vmem:[%s523] ss:$-95 sm:$0x3] %vm522, %v521
    %s525 = scalar_lea.vmem [#allocation0], 1
    %s526 = smov 3
    %v527 = vld [vmem:[%s525] ss:$-1 sm:%s526]
    %528 = vrot.lane.b32.xlu0 %v527, 62
    %v529 = vpop.permute.xlu0 %528
    %vm530 = vcmask 7168
    %s531 = scalar_lea.vmem %s1, 161
    %532 = vst.msk [vmem:[%s531] ss:$-95 sm:$0x3] %vm530, %v529
    %s533 = scalar_lea.vmem [#allocation0], 1
    %s534 = smov 3
    %v535 = vld [vmem:[%s533] ss:$-1 sm:%s534]
    %536 = vrot.lane.b32.xlu0 %v535, 61
    %v537 = vpop.permute.xlu0 %536
    %vm538 = vcmask 7168
    %s539 = scalar_lea.vmem %s1, 162
    %540 = vst.msk [vmem:[%s539] ss:$-95 sm:$0x3] %vm538, %v537
    %s541 = scalar_lea.vmem [#allocation0], 1
    %s542 = smov 3
    %v543 = vld [vmem:[%s541] ss:$-1 sm:%s542]
    %544 = vrot.lane.b32.xlu0 %v543, 60
    %v545 = vpop.permute.xlu0 %544
    %vm546 = vcmask 7168
    %s547 = scalar_lea.vmem %s1, 163
    %548 = vst.msk [vmem:[%s547] ss:$-95 sm:$0x3] %vm546, %v545
    %s549 = scalar_lea.vmem [#allocation0], 1
    %s550 = smov 3
    %v551 = vld [vmem:[%s549] ss:$-1 sm:%s550]
    %552 = vrot.lane.b32.xlu0 %v551, 59
    %v553 = vpop.permute.xlu0 %552
    %vm554 = vcmask 7168
    %s555 = scalar_lea.vmem %s1, 164
    %556 = vst.msk [vmem:[%s555] ss:$-95 sm:$0x3] %vm554, %v553
    %s557 = scalar_lea.vmem [#allocation0], 1
    %s558 = smov 3
    %v559 = vld [vmem:[%s557] ss:$-1 sm:%s558]
    %560 = vrot.lane.b32.xlu0 %v559, 58
    %v561 = vpop.permute.xlu0 %560
    %vm562 = vcmask 7168
    %s563 = scalar_lea.vmem %s1, 165
    %564 = vst.msk [vmem:[%s563] ss:$-95 sm:$0x3] %vm562, %v561
    %s565 = scalar_lea.vmem [#allocation0], 1
    %s566 = smov 3
    %v567 = vld [vmem:[%s565] ss:$-1 sm:%s566]
    %568 = vrot.lane.b32.xlu0 %v567, 57
    %v569 = vpop.permute.xlu0 %568
    %vm570 = vcmask 7168
    %s571 = scalar_lea.vmem %s1, 166
    %572 = vst.msk [vmem:[%s571] ss:$-95 sm:$0x3] %vm570, %v569
    %s573 = scalar_lea.vmem [#allocation0], 1
    %s574 = smov 3
    %v575 = vld [vmem:[%s573] ss:$-1 sm:%s574]
    %576 = vrot.lane.b32.xlu0 %v575, 56
    %v577 = vpop.permute.xlu0 %576
    %vm578 = vcmask 7168
    %s579 = scalar_lea.vmem %s1, 167
    %580 = vst.msk [vmem:[%s579] ss:$-95 sm:$0x3] %vm578, %v577
    %s581 = scalar_lea.vmem [#allocation0], 1
    %s582 = smov 3
    %v583 = vld [vmem:[%s581] ss:$-1 sm:%s582]
    %584 = vrot.lane.b32.xlu0 %v583, 55
    %v585 = vpop.permute.xlu0 %584
    %vm586 = vcmask 7168
    %s587 = scalar_lea.vmem %s1, 168
    %588 = vst.msk [vmem:[%s587] ss:$-95 sm:$0x3] %vm586, %v585
    %s589 = scalar_lea.vmem [#allocation0], 1
    %s590 = smov 3
    %v591 = vld [vmem:[%s589] ss:$-1 sm:%s590]
    %592 = vrot.lane.b32.xlu0 %v591, 54
    %v593 = vpop.permute.xlu0 %592
    %vm594 = vcmask 7168
    %s595 = scalar_lea.vmem %s1, 169
    %596 = vst.msk [vmem:[%s595] ss:$-95 sm:$0x3] %vm594, %v593
    %s597 = scalar_lea.vmem [#allocation0], 1
    %s598 = smov 3
    %v599 = vld [vmem:[%s597] ss:$-1 sm:%s598]
    %600 = vrot.lane.b32.xlu0 %v599, 53
    %v601 = vpop.permute.xlu0 %600
    %vm602 = vcmask 7168
    %s603 = scalar_lea.vmem %s1, 170
    %604 = vst.msk [vmem:[%s603] ss:$-95 sm:$0x3] %vm602, %v601
    %s605 = scalar_lea.vmem [#allocation0], 1
    %s606 = smov 3
    %v607 = vld [vmem:[%s605] ss:$-1 sm:%s606]
    %608 = vrot.lane.b32.xlu0 %v607, 52
    %v609 = vpop.permute.xlu0 %608
    %vm610 = vcmask 7168
    %s611 = scalar_lea.vmem %s1, 171
    %612 = vst.msk [vmem:[%s611] ss:$-95 sm:$0x3] %vm610, %v609
    %s613 = scalar_lea.vmem [#allocation0], 1
    %s614 = smov 3
    %v615 = vld [vmem:[%s613] ss:$-1 sm:%s614]
    %616 = vrot.lane.b32.xlu0 %v615, 51
    %v617 = vpop.permute.xlu0 %616
    %vm618 = vcmask 7168
    %s619 = scalar_lea.vmem %s1, 172
    %620 = vst.msk [vmem:[%s619] ss:$-95 sm:$0x3] %vm618, %v617
    %s621 = scalar_lea.vmem [#allocation0], 1
    %s622 = smov 3
    %v623 = vld [vmem:[%s621] ss:$-1 sm:%s622]
    %624 = vrot.lane.b32.xlu0 %v623, 50
    %v625 = vpop.permute.xlu0 %624
    %vm626 = vcmask 7168
    %s627 = scalar_lea.vmem %s1, 173
    %628 = vst.msk [vmem:[%s627] ss:$-95 sm:$0x3] %vm626, %v625
    %s629 = scalar_lea.vmem [#allocation0], 1
    %s630 = smov 3
    %v631 = vld [vmem:[%s629] ss:$-1 sm:%s630]
    %632 = vrot.lane.b32.xlu0 %v631, 49
    %v633 = vpop.permute.xlu0 %632
    %vm634 = vcmask 7168
    %s635 = scalar_lea.vmem %s1, 174
    %636 = vst.msk [vmem:[%s635] ss:$-95 sm:$0x3] %vm634, %v633
    %s637 = scalar_lea.vmem [#allocation0], 1
    %s638 = smov 3
    %v639 = vld [vmem:[%s637] ss:$-1 sm:%s638]
    %640 = vrot.lane.b32.xlu0 %v639, 48
    %v641 = vpop.permute.xlu0 %640
    %vm642 = vcmask 7168
    %s643 = scalar_lea.vmem %s1, 175
    %644 = vst.msk [vmem:[%s643] ss:$-95 sm:$0x3] %vm642, %v641
    %s645 = scalar_lea.vmem [#allocation0], 1
    %s646 = smov 3
    %v647 = vld [vmem:[%s645] ss:$-1 sm:%s646]
    %648 = vrot.lane.b32.xlu0 %v647, 47
    %v649 = vpop.permute.xlu0 %648
    %vm650 = vcmask 7168
    %s651 = scalar_lea.vmem %s1, 176
    %652 = vst.msk [vmem:[%s651] ss:$-95 sm:$0x3] %vm650, %v649
    %s653 = scalar_lea.vmem [#allocation0], 1
    %s654 = smov 3
    %v655 = vld [vmem:[%s653] ss:$-1 sm:%s654]
    %656 = vrot.lane.b32.xlu0 %v655, 46
    %v657 = vpop.permute.xlu0 %656
    %vm658 = vcmask 7168
    %s659 = scalar_lea.vmem %s1, 177
    %660 = vst.msk [vmem:[%s659] ss:$-95 sm:$0x3] %vm658, %v657
    %s661 = scalar_lea.vmem [#allocation0], 1
    %s662 = smov 3
    %v663 = vld [vmem:[%s661] ss:$-1 sm:%s662]
    %664 = vrot.lane.b32.xlu0 %v663, 45
    %v665 = vpop.permute.xlu0 %664
    %vm666 = vcmask 7168
    %s667 = scalar_lea.vmem %s1, 178
    %668 = vst.msk [vmem:[%s667] ss:$-95 sm:$0x3] %vm666, %v665
    %s669 = scalar_lea.vmem [#allocation0], 1
    %s670 = smov 3
    %v671 = vld [vmem:[%s669] ss:$-1 sm:%s670]
    %672 = vrot.lane.b32.xlu0 %v671, 44
    %v673 = vpop.permute.xlu0 %672
    %vm674 = vcmask 7168
    %s675 = scalar_lea.vmem %s1, 179
    %676 = vst.msk [vmem:[%s675] ss:$-95 sm:$0x3] %vm674, %v673
    %s677 = scalar_lea.vmem [#allocation0], 1
    %s678 = smov 3
    %v679 = vld [vmem:[%s677] ss:$-1 sm:%s678]
    %680 = vrot.lane.b32.xlu0 %v679, 43
    %v681 = vpop.permute.xlu0 %680
    %vm682 = vcmask 7168
    %s683 = scalar_lea.vmem %s1, 180
    %684 = vst.msk [vmem:[%s683] ss:$-95 sm:$0x3] %vm682, %v681
    %s685 = scalar_lea.vmem [#allocation0], 1
    %s686 = smov 3
    %v687 = vld [vmem:[%s685] ss:$-1 sm:%s686]
    %688 = vrot.lane.b32.xlu0 %v687, 42
    %v689 = vpop.permute.xlu0 %688
    %vm690 = vcmask 7168
    %s691 = scalar_lea.vmem %s1, 181
    %692 = vst.msk [vmem:[%s691] ss:$-95 sm:$0x3] %vm690, %v689
    %s693 = scalar_lea.vmem [#allocation0], 1
    %s694 = smov 3
    %v695 = vld [vmem:[%s693] ss:$-1 sm:%s694]
    %696 = vrot.lane.b32.xlu0 %v695, 41
    %v697 = vpop.permute.xlu0 %696
    %vm698 = vcmask 7168
    %s699 = scalar_lea.vmem %s1, 182
    %700 = vst.msk [vmem:[%s699] ss:$-95 sm:$0x3] %vm698, %v697
    %s701 = scalar_lea.vmem [#allocation0], 1
    %s702 = smov 3
    %v703 = vld [vmem:[%s701] ss:$-1 sm:%s702]
    %704 = vrot.lane.b32.xlu0 %v703, 40
    %v705 = vpop.permute.xlu0 %704
    %vm706 = vcmask 7168
    %s707 = scalar_lea.vmem %s1, 183
    %708 = vst.msk [vmem:[%s707] ss:$-95 sm:$0x3] %vm706, %v705
    %s709 = scalar_lea.vmem [#allocation0], 1
    %s710 = smov 3
    %v711 = vld [vmem:[%s709] ss:$-1 sm:%s710]
    %712 = vrot.lane.b32.xlu0 %v711, 39
    %v713 = vpop.permute.xlu0 %712
    %vm714 = vcmask 7168
    %s715 = scalar_lea.vmem %s1, 184
    %716 = vst.msk [vmem:[%s715] ss:$-95 sm:$0x3] %vm714, %v713
    %s717 = scalar_lea.vmem [#allocation0], 1
    %s718 = smov 3
    %v719 = vld [vmem:[%s717] ss:$-1 sm:%s718]
    %720 = vrot.lane.b32.xlu0 %v719, 38
    %v721 = vpop.permute.xlu0 %720
    %vm722 = vcmask 7168
    %s723 = scalar_lea.vmem %s1, 185
    %724 = vst.msk [vmem:[%s723] ss:$-95 sm:$0x3] %vm722, %v721
    %s725 = scalar_lea.vmem [#allocation0], 1
    %s726 = smov 3
    %v727 = vld [vmem:[%s725] ss:$-1 sm:%s726]
    %728 = vrot.lane.b32.xlu0 %v727, 37
    %v729 = vpop.permute.xlu0 %728
    %vm730 = vcmask 7168
    %s731 = scalar_lea.vmem %s1, 186
    %732 = vst.msk [vmem:[%s731] ss:$-95 sm:$0x3] %vm730, %v729
    %s733 = scalar_lea.vmem [#allocation0], 1
    %s734 = smov 3
    %v735 = vld [vmem:[%s733] ss:$-1 sm:%s734]
    %736 = vrot.lane.b32.xlu0 %v735, 36
    %v737 = vpop.permute.xlu0 %736
    %vm738 = vcmask 7168
    %s739 = scalar_lea.vmem %s1, 187
    %740 = vst.msk [vmem:[%s739] ss:$-95 sm:$0x3] %vm738, %v737
    %s741 = scalar_lea.vmem [#allocation0], 1
    %s742 = smov 3
    %v743 = vld [vmem:[%s741] ss:$-1 sm:%s742]
    %744 = vrot.lane.b32.xlu0 %v743, 35
    %v745 = vpop.permute.xlu0 %744
    %vm746 = vcmask 7168
    %s747 = scalar_lea.vmem %s1, 188
    %748 = vst.msk [vmem:[%s747] ss:$-95 sm:$0x3] %vm746, %v745
    %s749 = scalar_lea.vmem [#allocation0], 1
    %s750 = smov 3
    %v751 = vld [vmem:[%s749] ss:$-1 sm:%s750]
    %752 = vrot.lane.b32.xlu0 %v751, 34
    %v753 = vpop.permute.xlu0 %752
    %vm754 = vcmask 7168
    %s755 = scalar_lea.vmem %s1, 189
    %756 = vst.msk [vmem:[%s755] ss:$-95 sm:$0x3] %vm754, %v753

// kernel: codebook_contrastive_head2.1
$region0: #{codebook_contrastive_head2.1}
  #allocation0 [shape = 'u32[]', space=smem, size = 0x4, offset = 0x4, fixed_abs, tag = 'smem constant byte address 0x4 - core index']
  #allocation1 [shape = 'u32[72,128]{1,0:T(1,128)}', space=vmem, size = 0x9000, scoped, tag = 'internal scratch']
  %s0 = inlined_call_operand.vmem [shape: s32[190,1], index: 0, kind: input, shape index: {}]
  %s1 = inlined_call_operand.vmem [shape: f32[190,256], index: 1, kind: input, shape index: {}]
  %s2 = inlined_call_operand.vmem [shape: f32[256,128], index: 2, kind: input, shape index: {}]
  %s3 = inlined_call_operand.vmem [shape: f32[190,128], index: 3, kind: output, shape index: {}]
  %s4 = sld [smem:[#allocation0]]
  $region22: #{codebook_contrastive_head2.1} parent=0
    _
  %s6 = ssub.s32 1, %s4
  %s7 = scalar_select 0, %s6, %s4
  // Predicated region
  $region2: #{codebook_contrastive_head2.1} parent=0 // pred_check
    _
  $region3: #{codebook_contrastive_head2.1} parent=0 // pred_check_branch
    %9 = sbr.rel (0) target = $region5
  $region4: #{codebook_contrastive_head2.1} parent=0 // pred_region
    _
  $region5: #{codebook_contrastive_head2.1} parent=0 // pred_fallthru
    _
  // Predicated region
  $region6: #{codebook_contrastive_head2.1} parent=0 // pred_check
    _
  $region7: #{codebook_contrastive_head2.1} parent=0 // pred_check_branch
    %11 = sbr.rel (0) target = $region9
  $region8: #{codebook_contrastive_head2.1} parent=0 // pred_region
    _
  $region9: #{codebook_contrastive_head2.1} parent=0 // pred_fallthru
    _
  // Predicated region
  $region10: #{codebook_contrastive_head2.1} parent=0 // pred_check
    _
  $region11: #{codebook_contrastive_head2.1} parent=0 // pred_check_branch
    %13 = sbr.rel (0) target = $region13
  $region12: #{codebook_contrastive_head2.1} parent=0 // pred_region
    _
  $region13: #{codebook_contrastive_head2.1} parent=0 // pred_fallthru
    _
  %v14 = vld [vmem:[%s1] sm:$0xff]
  %v15 = vld [vmem:[%s1 + $0x8] sm:$0xff]
  %v16 = vld [vmem:[%s1 + $0x10] sm:$0xff]
  %v17 = vld [vmem:[%s1 + $0x18] sm:$0xff]
  %v18 = vld [vmem:[%s1 + $0x20] sm:$0xff]
  %v19 = vld [vmem:[%s1 + $0x28] sm:$0xff]
  %v20 = vld [vmem:[%s1 + $0x30] sm:$0xff]
  %v21 = vld [vmem:[%s1 + $0x38] sm:$0xff]
  %v22 = vld [vmem:[%s1 + $0x40] sm:$0xff]
  %v23 = vld [vmem:[%s1 + $0x48] sm:$0xff]
  %v24 = vld [vmem:[%s1 + $0x50] sm:$0xff]
  %v25 = vld [vmem:[%s1 + $0x58] sm:$0xff]
  %v26 = vld [vmem:[%s1 + $0x60] sm:$0xff]
  %v27 = vld [vmem:[%s1 + $0x68] sm:$0xff]
  %v28 = vld [vmem:[%s1 + $0x70] sm:$0xff]
  %v29 = vld [vmem:[%s1 + $0x78] sm:$0xff]
  %v30 = vld [vmem:[%s1 + $0x80] sm:$0xff]
  %v31 = vld [vmem:[%s1 + $0x88] sm:$0xff]
  %v32 = vld [vmem:[%s1 + $0x90] sm:$0xff]
  %v33 = vld [vmem:[%s1 + $0x98] sm:$0xff]
  %v34 = vld [vmem:[%s1 + $0xa0] sm:$0xff]
  %v35 = vld [vmem:[%s1 + $0xa8] sm:$0xff]
  %v36 = vld [vmem:[%s1 + $0xb0] sm:$0xff]
  %v37 = vld [vmem:[%s1 + $0xb8] sm:$0xff]
  %v38 = vld [vmem:[%s1 + $0xc0] sm:$0xff]
  %v39 = vld [vmem:[%s1 + $0xc8] sm:$0xff]
  %v40 = vld [vmem:[%s1 + $0xd0] sm:$0xff]
  %v41 = vld [vmem:[%s1 + $0xd8] sm:$0xff]
  %v42 = vld [vmem:[%s1 + $0xe0] sm:$0xff]
  %v43 = vld [vmem:[%s1 + $0xe8] sm:$0xff]
  %v44 = vld [vmem:[%s1 + $0xf0] sm:$0xff]
  %v45 = vld [vmem:[%s1 + $0xf8] sm:$0xff]
  %v46 = vld [vmem:[%s1 + $0x100] sm:$0xff]
  %v47 = vld [vmem:[%s1 + $0x108] sm:$0xff]
  %v48 = vld [vmem:[%s1 + $0x110] sm:$0xff]
  %v49 = vld [vmem:[%s1 + $0x118] sm:$0xff]
  %v50 = vld [vmem:[%s1 + $0x120] sm:$0xff]
  %v51 = vld [vmem:[%s1 + $0x128] sm:$0xff]
  %v52 = vld [vmem:[%s1 + $0x130] sm:$0xff]
  %v53 = vld [vmem:[%s1 + $0x138] sm:$0xff]
  %v54 = vld [vmem:[%s1 + $0x140] sm:$0xff]
  %v55 = vld [vmem:[%s1 + $0x148] sm:$0xff]
  %v56 = vld [vmem:[%s1 + $0x150] sm:$0xff]
  %v57 = vld [vmem:[%s1 + $0x158] sm:$0xff]
  %v58 = vld [vmem:[%s1 + $0x160] sm:$0xff]
  %v59 = vld [vmem:[%s1 + $0x168] sm:$0xff]
  %v60 = vld [vmem:[%s1 + $0x170] sm:$0x3f]
  %v61 = vld [vmem:[%s1 + $0x178] sm:$0x3f]
  %v62 = vld [vmem:[%s2] sm:$0xff]
  %v63 = vld [vmem:[%s2 + $0x8] sm:$0xff]
  %v64 = vld [vmem:[%s2 + $0x10] sm:$0xff]
  %v65 = vld [vmem:[%s2 + $0x18] sm:$0xff]
  %v66 = vld [vmem:[%s2 + $0x20] sm:$0xff]
  %v67 = vld [vmem:[%s2 + $0x28] sm:$0xff]
  %v68 = vld [vmem:[%s2 + $0x30] sm:$0xff]
  %v69 = vld [vmem:[%s2 + $0x38] sm:$0xff]
  %v70 = vld [vmem:[%s2 + $0x40] sm:$0xff]
  %v71 = vld [vmem:[%s2 + $0x48] sm:$0xff]
  %v72 = vld [vmem:[%s2 + $0x50] sm:$0xff]
  %v73 = vld [vmem:[%s2 + $0x58] sm:$0xff]
  %v74 = vld [vmem:[%s2 + $0x60] sm:$0xff]
  %v75 = vld [vmem:[%s2 + $0x68] sm:$0xff]
  %v76 = vld [vmem:[%s2 + $0x70] sm:$0xff]
  %v77 = vld [vmem:[%s2 + $0x78] sm:$0xff]
  %v78 = vld [vmem:[%s2 + $0x80] sm:$0xff]
  %v79 = vld [vmem:[%s2 + $0x88] sm:$0xff]
  %v80 = vld [vmem:[%s2 + $0x90] sm:$0xff]
  %v81 = vld [vmem:[%s2 + $0x98] sm:$0xff]
  %v82 = vld [vmem:[%s2 + $0xa0] sm:$0xff]
  %v83 = vld [vmem:[%s2 + $0xa8] sm:$0xff]
  %v84 = vld [vmem:[%s2 + $0xb0] sm:$0xff]
  %v85 = vld [vmem:[%s2 + $0xb8] sm:$0xff]
  %v86 = vld [vmem:[%s2 + $0xc0] sm:$0xff]
  %v87 = vld [vmem:[%s2 + $0xc8] sm:$0xff]
  %v88 = vld [vmem:[%s2 + $0xd0] sm:$0xff]
  %v89 = vld [vmem:[%s2 + $0xd8] sm:$0xff]
  %v90 = vld [vmem:[%s2 + $0xe0] sm:$0xff]
  %v91 = vld [vmem:[%s2 + $0xe8] sm:$0xff]
  %v92 = vld [vmem:[%s2 + $0xf0] sm:$0xff]
  %v93 = vld [vmem:[%s2 + $0xf8] sm:$0xff]
  %94 = vmatpush.msra.mxu0 %v77
  %95 = vmatpush.msra.mxu0 %v76
  %96 = vmatpush.msra.mxu0 %v75
  %97 = vmatpush.msra.mxu0 %v74
  %98 = vmatpush.msra.mxu0 %v73
  %99 = vmatpush.msra.mxu0 %v72
  %100 = vmatpush.msra.mxu0 %v71
  %101 = vmatpush.msra.mxu0 %v70
  %102 = vmatpush.msra.mxu0 %v69
  %103 = vmatpush.msra.mxu0 %v68
  %104 = vmatpush.msra.mxu0 %v67
  %105 = vmatpush.msra.mxu0 %v66
  %106 = vmatpush.msra.mxu0 %v65
  %107 = vmatpush.msra.mxu0 %v64
  %108 = vmatpush.msra.mxu0 %v63
  %109 = vmatpush.msra.mxu0 %v62
  %110 = vmatmul.f32.gmra.mxu0 %v14
  %v111 = vpop.f32.mrf.mxu0
  %v112 = vadd.f32 0.0, %v111
  %113 = vmatmul.f32.gmra.mxu0 %v16
  %v114 = vpop.f32.mrf.mxu0
  %v115 = vadd.f32 0.0, %v114
  %116 = vmatmul.f32.gmra.mxu0 %v18
  %v117 = vpop.f32.mrf.mxu0
  %v118 = vadd.f32 0.0, %v117
  %119 = vmatmul.f32.gmra.mxu0 %v20
  %v120 = vpop.f32.mrf.mxu0
  %v121 = vadd.f32 0.0, %v120
  %122 = vmatmul.f32.gmra.mxu0 %v22
  %v123 = vpop.f32.mrf.mxu0
  %v124 = vadd.f32 0.0, %v123
  %125 = vmatmul.f32.gmra.mxu0 %v24
  %v126 = vpop.f32.mrf.mxu0
  %v127 = vadd.f32 0.0, %v126
  %128 = vmatmul.f32.gmra.mxu0 %v26
  %v129 = vpop.f32.mrf.mxu0
  %v130 = vadd.f32 0.0, %v129
  %131 = vmatmul.f32.gmra.mxu0 %v28
  %v132 = vpop.f32.mrf.mxu0
  %v133 = vadd.f32 0.0, %v132
  %134 = vmatmul.f32.gmra.mxu0 %v30
  %v135 = vpop.f32.mrf.mxu0
  %v136 = vadd.f32 0.0, %v135
  %137 = vmatmul.f32.gmra.mxu0 %v32
  %v138 = vpop.f32.mrf.mxu0
  %v139 = vadd.f32 0.0, %v138
  %140 = vmatmul.f32.gmra.mxu0 %v34
  %v141 = vpop.f32.mrf.mxu0
  %v142 = vadd.f32 0.0, %v141
  %143 = vmatmul.f32.gmra.mxu0 %v36
  %v144 = vpop.f32.mrf.mxu0
  %v145 = vadd.f32 0.0, %v144
  %146 = vmatmul.f32.gmra.mxu0 %v38
  %v147 = vpop.f32.mrf.mxu0
  %v148 = vadd.f32 0.0, %v147
  %149 = vmatmul.f32.gmra.mxu0 %v40
  %v150 = vpop.f32.mrf.mxu0
  %v151 = vadd.f32 0.0, %v150
  %152 = vmatmul.f32.gmra.mxu0 %v42
  %v153 = vpop.f32.mrf.mxu0
  %v154 = vadd.f32 0.0, %v153
  %155 = vmatmul.f32.gmra.mxu0 %v44
  %v156 = vpop.f32.mrf.mxu0
  %v157 = vadd.f32 0.0, %v156
  %158 = vmatmul.f32.gmra.mxu0 %v46
  %v159 = vpop.f32.mrf.mxu0
  %v160 = vadd.f32 0.0, %v159
  %161 = vmatmul.f32.gmra.mxu0 %v48
  %v162 = vpop.f32.mrf.mxu0
  %v163 = vadd.f32 0.0, %v162
  %164 = vmatmul.f32.gmra.mxu0 %v50
  %v165 = vpop.f32.mrf.mxu0
  %v166 = vadd.f32 0.0, %v165
  %167 = vmatmul.f32.gmra.mxu0 %v52
  %v168 = vpop.f32.mrf.mxu0
  %v169 = vadd.f32 0.0, %v168
  %170 = vmatmul.f32.gmra.mxu0 %v54
  %v171 = vpop.f32.mrf.mxu0
  %v172 = vadd.f32 0.0, %v171
  %173 = vmatmul.f32.gmra.mxu0 %v56
  %v174 = vpop.f32.mrf.mxu0
  %v175 = vadd.f32 0.0, %v174
  %176 = vmatmul.f32.gmra.mxu0 %v58
  %v177 = vpop.f32.mrf.mxu0
  %v178 = vadd.f32 0.0, %v177
  %179 = vmatmul.f32.gmra.mxu0 %v60
  %v180 = vpop.f32.mrf.mxu0
  %v181 = vadd.f32 0.0, %v180
  %182 = vdwg.mxu0
  %183 = vmatpush.msra.mxu0 %v93
  %184 = vmatpush.msra.mxu0 %v92
  %185 = vmatpush.msra.mxu0 %v91
  %186 = vmatpush.msra.mxu0 %v90
  %187 = vmatpush.msra.mxu0 %v89
  %188 = vmatpush.msra.mxu0 %v88
  %189 = vmatpush.msra.mxu0 %v87
  %190 = vmatpush.msra.mxu0 %v86
  %191 = vmatpush.msra.mxu0 %v85
  %192 = vmatpush.msra.mxu0 %v84
  %193 = vmatpush.msra.mxu0 %v83
  %194 = vmatpush.msra.mxu0 %v82
  %195 = vmatpush.msra.mxu0 %v81
  %196 = vmatpush.msra.mxu0 %v80
  %197 = vmatpush.msra.mxu0 %v79
  %198 = vmatpush.msra.mxu0 %v78
  %199 = vmatmul.f32.gmra.mxu0 %v15
  %v200 = vpop.f32.mrf.mxu0
  %v201 = vadd.f32 %v112, %v200
  %202 = vmatmul.f32.gmra.mxu0 %v17
  %v203 = vpop.f32.mrf.mxu0
  %v204 = vadd.f32 %v115, %v203
  %205 = vmatmul.f32.gmra.mxu0 %v19
  %v206 = vpop.f32.mrf.mxu0
  %v207 = vadd.f32 %v118, %v206
  %208 = vmatmul.f32.gmra.mxu0 %v21
  %v209 = vpop.f32.mrf.mxu0
  %v210 = vadd.f32 %v121, %v209
  %211 = vmatmul.f32.gmra.mxu0 %v23
  %v212 = vpop.f32.mrf.mxu0
  %v213 = vadd.f32 %v124, %v212
  %214 = vmatmul.f32.gmra.mxu0 %v25
  %v215 = vpop.f32.mrf.mxu0
  %v216 = vadd.f32 %v127, %v215
  %217 = vmatmul.f32.gmra.mxu0 %v27
  %v218 = vpop.f32.mrf.mxu0
  %v219 = vadd.f32 %v130, %v218
  %220 = vmatmul.f32.gmra.mxu0 %v29
  %v221 = vpop.f32.mrf.mxu0
  %v222 = vadd.f32 %v133, %v221
  %223 = vmatmul.f32.gmra.mxu0 %v31
  %v224 = vpop.f32.mrf.mxu0
  %v225 = vadd.f32 %v136, %v224
  %226 = vmatmul.f32.gmra.mxu0 %v33
  %v227 = vpop.f32.mrf.mxu0
  %v228 = vadd.f32 %v139, %v227
  %229 = vmatmul.f32.gmra.mxu0 %v35
  %v230 = vpop.f32.mrf.mxu0
  %v231 = vadd.f32 %v142, %v230
  %232 = vmatmul.f32.gmra.mxu0 %v37
  %v233 = vpop.f32.mrf.mxu0
  %v234 = vadd.f32 %v145, %v233
  %235 = vmatmul.f32.gmra.mxu0 %v39
  %v236 = vpop.f32.mrf.mxu0
  %v237 = vadd.f32 %v148, %v236
  %238 = vmatmul.f32.gmra.mxu0 %v41
  %v239 = vpop.f32.mrf.mxu0
  %v240 = vadd.f32 %v151, %v239
  %241 = vmatmul.f32.gmra.mxu0 %v43
  %v242 = vpop.f32.mrf.mxu0
  %v243 = vadd.f32 %v154, %v242
  %244 = vmatmul.f32.gmra.mxu0 %v45
  %v245 = vpop.f32.mrf.mxu0
  %v246 = vadd.f32 %v157, %v245
  %247 = vmatmul.f32.gmra.mxu0 %v47
  %v248 = vpop.f32.mrf.mxu0
  %v249 = vadd.f32 %v160, %v248
  %250 = vmatmul.f32.gmra.mxu0 %v49
  %v251 = vpop.f32.mrf.mxu0
  %v252 = vadd.f32 %v163, %v251
  %253 = vmatmul.f32.gmra.mxu0 %v51
  %v254 = vpop.f32.mrf.mxu0
  %v255 = vadd.f32 %v166, %v254
  %256 = vmatmul.f32.gmra.mxu0 %v53
  %v257 = vpop.f32.mrf.mxu0
  %v258 = vadd.f32 %v169, %v257
  %259 = vmatmul.f32.gmra.mxu0 %v55
  %v260 = vpop.f32.mrf.mxu0
  %v261 = vadd.f32 %v172, %v260
  %262 = vmatmul.f32.gmra.mxu0 %v57
  %v263 = vpop.f32.mrf.mxu0
  %v264 = vadd.f32 %v175, %v263
  %265 = vmatmul.f32.gmra.mxu0 %v59
  %v266 = vpop.f32.mrf.mxu0
  %v267 = vadd.f32 %v178, %v266
  %268 = vmatmul.f32.gmra.mxu0 %v61
  %v269 = vpop.f32.mrf.mxu0
  %v270 = vadd.f32 %v181, %v269
  %271 = vdwg.mxu0
  %v272 = vlaneseq
  %v273 = vand.u32 %v272, 127
  %v274 = vld [vmem:[%s0] sm:$0xff]
  %v275 = vld [vmem:[%s0 + $0x8] sm:$0xff]
  %v276 = vld [vmem:[%s0 + $0x10] sm:$0xff]
  %v277 = vld [vmem:[%s0 + $0x18] sm:$0xff]
  %v278 = vld [vmem:[%s0 + $0x20] sm:$0xff]
  %v279 = vld [vmem:[%s0 + $0x28] sm:$0xff]
  %v280 = vld [vmem:[%s0 + $0x30] sm:$0xff]
  %v281 = vld [vmem:[%s0 + $0x38] sm:$0xff]
  %v282 = vld [vmem:[%s0 + $0x40] sm:$0xff]
  %v283 = vld [vmem:[%s0 + $0x48] sm:$0xff]
  %v284 = vld [vmem:[%s0 + $0x50] sm:$0xff]
  %v285 = vld [vmem:[%s0 + $0x58] sm:$0xff]
  %v286 = vld [vmem:[%s0 + $0x60] sm:$0xff]
  %v287 = vld [vmem:[%s0 + $0x68] sm:$0xff]
  %v288 = vld [vmem:[%s0 + $0x70] sm:$0xff]
  %v289 = vld [vmem:[%s0 + $0x78] sm:$0xff]
  %v290 = vld [vmem:[%s0 + $0x80] sm:$0xff]
  %v291 = vld [vmem:[%s0 + $0x88] sm:$0xff]
  %v292 = vld [vmem:[%s0 + $0x90] sm:$0xff]
  %v293 = vld [vmem:[%s0 + $0x98] sm:$0xff]
  %v294 = vld [vmem:[%s0 + $0xa0] sm:$0xff]
  %v295 = vld [vmem:[%s0 + $0xa8] sm:$0xff]
  %v296 = vld [vmem:[%s0 + $0xb0] sm:$0xff]
  %v297 = vld [vmem:[%s0 + $0xb8] sm:$0x3f]
  %298 = vset.pattern.permute.xlu0 0
  %299 = vperm.xlu0 %298, %v274
  %v300 = vpop.permute.xlu0 %299
  %301 = vset.pattern.permute.xlu0 0
  %302 = vperm.xlu0 %301, %v275
  %v303 = vpop.permute.xlu0 %302
  %304 = vset.pattern.permute.xlu0 0
  %305 = vperm.xlu0 %304, %v276
  %v306 = vpop.permute.xlu0 %305
  %307 = vset.pattern.permute.xlu0 0
  %308 = vperm.xlu0 %307, %v277
  %v309 = vpop.permute.xlu0 %308
  %310 = vset.pattern.permute.xlu0 0
  %311 = vperm.xlu0 %310, %v278
  %v312 = vpop.permute.xlu0 %311
  %313 = vset.pattern.permute.xlu0 0
  %314 = vperm.xlu0 %313, %v279
  %v315 = vpop.permute.xlu0 %314
  %316 = vset.pattern.permute.xlu0 0
  %317 = vperm.xlu0 %316, %v280
  %v318 = vpop.permute.xlu0 %317
  %319 = vset.pattern.permute.xlu0 0
  %320 = vperm.xlu0 %319, %v281
  %v321 = vpop.permute.xlu0 %320
  %322 = vset.pattern.permute.xlu0 0
  %323 = vperm.xlu0 %322, %v282
  %v324 = vpop.permute.xlu0 %323
  %325 = vset.pattern.permute.xlu0 0
  %326 = vperm.xlu0 %325, %v283
  %v327 = vpop.permute.xlu0 %326
  %328 = vset.pattern.permute.xlu0 0
  %329 = vperm.xlu0 %328, %v284
  %v330 = vpop.permute.xlu0 %329
  %331 = vset.pattern.permute.xlu0 0
  %332 = vperm.xlu0 %331, %v285
  %v333 = vpop.permute.xlu0 %332
  %334 = vset.pattern.permute.xlu0 0
  %335 = vperm.xlu0 %334, %v286
  %v336 = vpop.permute.xlu0 %335
  %337 = vset.pattern.permute.xlu0 0
  %338 = vperm.xlu0 %337, %v287
  %v339 = vpop.permute.xlu0 %338
  %340 = vset.pattern.permute.xlu0 0
  %341 = vperm.xlu0 %340, %v288
  %v342 = vpop.permute.xlu0 %341
  %343 = vset.pattern.permute.xlu0 0
  %344 = vperm.xlu0 %343, %v289
  %v345 = vpop.permute.xlu0 %344
  %346 = vset.pattern.permute.xlu0 0
  %347 = vperm.xlu0 %346, %v290
  %v348 = vpop.permute.xlu0 %347
  %349 = vset.pattern.permute.xlu0 0
  %350 = vperm.xlu0 %349, %v291
  %v351 = vpop.permute.xlu0 %350
  %352 = vset.pattern.permute.xlu0 0
  %353 = vperm.xlu0 %352, %v292
  %v354 = vpop.permute.xlu0 %353
  %355 = vset.pattern.permute.xlu0 0
  %356 = vperm.xlu0 %355, %v293
  %v357 = vpop.permute.xlu0 %356
  %358 = vset.pattern.permute.xlu0 0
  %359 = vperm.xlu0 %358, %v294
  %v360 = vpop.permute.xlu0 %359
  %361 = vset.pattern.permute.xlu0 0
  %362 = vperm.xlu0 %361, %v295
  %v363 = vpop.permute.xlu0 %362
  %364 = vset.pattern.permute.xlu0 0
  %365 = vperm.xlu0 %364, %v296
  %v366 = vpop.permute.xlu0 %365
  %367 = vset.pattern.permute.xlu0 0
  %368 = vperm.xlu0 %367, %v297
  %v369 = vpop.permute.xlu0 %368
  %vm370 = vcmp.eq.s32.totalorder %v273, %v300
  %vm371 = vcmp.eq.s32.totalorder %v273, %v303
  %vm372 = vcmp.eq.s32.totalorder %v273, %v306
  %vm373 = vcmp.eq.s32.totalorder %v273, %v309
  %vm374 = vcmp.eq.s32.totalorder %v273, %v312
  %vm375 = vcmp.eq.s32.totalorder %v273, %v315
  %vm376 = vcmp.eq.s32.totalorder %v273, %v318
  %vm377 = vcmp.eq.s32.totalorder %v273, %v321
  %vm378 = vcmp.eq.s32.totalorder %v273, %v324
  %vm379 = vcmp.eq.s32.totalorder %v273, %v327
  %vm380 = vcmp.eq.s32.totalorder %v273, %v330
  %vm381 = vcmp.eq.s32.totalorder %v273, %v333
  %vm382 = vcmp.eq.s32.totalorder %v273, %v336
  %vm383 = vcmp.eq.s32.totalorder %v273, %v339
  %vm384 = vcmp.eq.s32.totalorder %v273, %v342
  %vm385 = vcmp.eq.s32.totalorder %v273, %v345
  %vm386 = vcmp.eq.s32.totalorder %v273, %v348
  %vm387 = vcmp.eq.s32.totalorder %v273, %v351
  %vm388 = vcmp.eq.s32.totalorder %v273, %v354
  %vm389 = vcmp.eq.s32.totalorder %v273, %v357
  %vm390 = vcmp.eq.s32.totalorder %v273, %v360
  %vm391 = vcmp.eq.s32.totalorder %v273, %v363
  %vm392 = vcmp.eq.s32.totalorder %v273, %v366
  %vm393 = vcmp.eq.s32.totalorder %v273, %v369
  %v394 = vadd.s32 %v274, 19
  %v395 = vadd.s32 %v275, 19
  %v396 = vadd.s32 %v276, 19
  %v397 = vadd.s32 %v277, 19
  %v398 = vadd.s32 %v278, 19
  %v399 = vadd.s32 %v279, 19
  %v400 = vadd.s32 %v280, 19
  %v401 = vadd.s32 %v281, 19
  %v402 = vadd.s32 %v282, 19
  %v403 = vadd.s32 %v283, 19
  %v404 = vadd.s32 %v284, 19
  %v405 = vadd.s32 %v285, 19
  %v406 = vadd.s32 %v286, 19
  %v407 = vadd.s32 %v287, 19
  %v408 = vadd.s32 %v288, 19
  %v409 = vadd.s32 %v289, 19
  %v410 = vadd.s32 %v290, 19
  %v411 = vadd.s32 %v291, 19
  %v412 = vadd.s32 %v292, 19
  %v413 = vadd.s32 %v293, 19
  %v414 = vadd.s32 %v294, 19
  %v415 = vadd.s32 %v295, 19
  %v416 = vadd.s32 %v296, 19
  %v417 = vadd.s32 %v297, 19
  %418 = vset.pattern.permute.xlu0 0
  %419 = vperm.xlu0 %418, %v394
  %v420 = vpop.permute.xlu0 %419
  %421 = vset.pattern.permute.xlu0 0
  %422 = vperm.xlu0 %421, %v395
  %v423 = vpop.permute.xlu0 %422
  %424 = vset.pattern.permute.xlu0 0
  %425 = vperm.xlu0 %424, %v396
  %v426 = vpop.permute.xlu0 %425
  %427 = vset.pattern.permute.xlu0 0
  %428 = vperm.xlu0 %427, %v397
  %v429 = vpop.permute.xlu0 %428
  %430 = vset.pattern.permute.xlu0 0
  %431 = vperm.xlu0 %430, %v398
  %v432 = vpop.permute.xlu0 %431
  %433 = vset.pattern.permute.xlu0 0
  %434 = vperm.xlu0 %433, %v399
  %v435 = vpop.permute.xlu0 %434
  %436 = vset.pattern.permute.xlu0 0
  %437 = vperm.xlu0 %436, %v400
  %v438 = vpop.permute.xlu0 %437
  %439 = vset.pattern.permute.xlu0 0
  %440 = vperm.xlu0 %439, %v401
  %v441 = vpop.permute.xlu0 %440
  %442 = vset.pattern.permute.xlu0 0
  %443 = vperm.xlu0 %442, %v402
  %v444 = vpop.permute.xlu0 %443
  %445 = vset.pattern.permute.xlu0 0
  %446 = vperm.xlu0 %445, %v403
  %v447 = vpop.permute.xlu0 %446
  %448 = vset.pattern.permute.xlu0 0
  %449 = vperm.xlu0 %448, %v404
  %v450 = vpop.permute.xlu0 %449
  %451 = vset.pattern.permute.xlu0 0
  %452 = vperm.xlu0 %451, %v405
  %v453 = vpop.permute.xlu0 %452
  %454 = vset.pattern.permute.xlu0 0
  %455 = vperm.xlu0 %454, %v406
  %v456 = vpop.permute.xlu0 %455
  %457 = vset.pattern.permute.xlu0 0
  %458 = vperm.xlu0 %457, %v407
  %v459 = vpop.permute.xlu0 %458
  %460 = vset.pattern.permute.xlu0 0
  %461 = vperm.xlu0 %460, %v408
  %v462 = vpop.permute.xlu0 %461
  %463 = vset.pattern.permute.xlu0 0
  %464 = vperm.xlu0 %463, %v409
  %v465 = vpop.permute.xlu0 %464
  %466 = vset.pattern.permute.xlu0 0
  %467 = vperm.xlu0 %466, %v410
  %v468 = vpop.permute.xlu0 %467
  %469 = vset.pattern.permute.xlu0 0
  %470 = vperm.xlu0 %469, %v411
  %v471 = vpop.permute.xlu0 %470
  %472 = vset.pattern.permute.xlu0 0
  %473 = vperm.xlu0 %472, %v412
  %v474 = vpop.permute.xlu0 %473
  %475 = vset.pattern.permute.xlu0 0
  %476 = vperm.xlu0 %475, %v413
  %v477 = vpop.permute.xlu0 %476
  %478 = vset.pattern.permute.xlu0 0
  %479 = vperm.xlu0 %478, %v414
  %v480 = vpop.permute.xlu0 %479
  %481 = vset.pattern.permute.xlu0 0
  %482 = vperm.xlu0 %481, %v415
  %v483 = vpop.permute.xlu0 %482
  %484 = vset.pattern.permute.xlu0 0
  %485 = vperm.xlu0 %484, %v416
  %v486 = vpop.permute.xlu0 %485
  %487 = vset.pattern.permute.xlu0 0
  %488 = vperm.xlu0 %487, %v417
  %v489 = vpop.permute.xlu0 %488
  %vm490 = vcmp.eq.s32.totalorder %v273, %v420
  %vm491 = vcmp.eq.s32.totalorder %v273, %v423
  %vm492 = vcmp.eq.s32.totalorder %v273, %v426
  %vm493 = vcmp.eq.s32.totalorder %v273, %v429
  %vm494 = vcmp.eq.s32.totalorder %v273, %v432
  %vm495 = vcmp.eq.s32.totalorder %v273, %v435
  %vm496 = vcmp.eq.s32.totalorder %v273, %v438
  %vm497 = vcmp.eq.s32.totalorder %v273, %v441
  %vm498 = vcmp.eq.s32.totalorder %v273, %v444
  %vm499 = vcmp.eq.s32.totalorder %v273, %v447
  %vm500 = vcmp.eq.s32.totalorder %v273, %v450
  %vm501 = vcmp.eq.s32.totalorder %v273, %v453
  %vm502 = vcmp.eq.s32.totalorder %v273, %v456
  %vm503 = vcmp.eq.s32.totalorder %v273, %v459
  %vm504 = vcmp.eq.s32.totalorder %v273, %v462
  %vm505 = vcmp.eq.s32.totalorder %v273, %v465
  %vm506 = vcmp.eq.s32.totalorder %v273, %v468
  %vm507 = vcmp.eq.s32.totalorder %v273, %v471
  %vm508 = vcmp.eq.s32.totalorder %v273, %v474
  %vm509 = vcmp.eq.s32.totalorder %v273, %v477
  %vm510 = vcmp.eq.s32.totalorder %v273, %v480
  %vm511 = vcmp.eq.s32.totalorder %v273, %v483
  %vm512 = vcmp.eq.s32.totalorder %v273, %v486
  %vm513 = vcmp.eq.s32.totalorder %v273, %v489
  %vm514 = vcmp.eq.s32.totalorder %v273, 19
  %v515 = vsel %vm490, %v201, 0.0
  %v516 = vsel %vm491, %v204, 0.0
  %v517 = vsel %vm492, %v207, 0.0
  %v518 = vsel %vm493, %v210, 0.0
  %v519 = vsel %vm494, %v213, 0.0
  %v520 = vsel %vm495, %v216, 0.0
  %v521 = vsel %vm496, %v219, 0.0
  %v522 = vsel %vm497, %v222, 0.0
  %v523 = vsel %vm498, %v225, 0.0
  %v524 = vsel %vm499, %v228, 0.0
  %v525 = vsel %vm500, %v231, 0.0
  %v526 = vsel %vm501, %v234, 0.0
  %v527 = vsel %vm502, %v237, 0.0
  %v528 = vsel %vm503, %v240, 0.0
  %v529 = vsel %vm504, %v243, 0.0
  %v530 = vsel %vm505, %v246, 0.0
  %v531 = vsel %vm506, %v249, 0.0
  %v532 = vsel %vm507, %v252, 0.0
  %v533 = vsel %vm508, %v255, 0.0
  %v534 = vsel %vm509, %v258, 0.0
  %v535 = vsel %vm510, %v261, 0.0
  %v536 = vsel %vm511, %v264, 0.0
  %v537 = vsel %vm512, %v267, 0.0
  %v538 = vsel %vm513, %v270, 0.0
  %539 = vadd.xlane.f32.xlu0 %v515
  %v540 = vpop.xlane.xlu0 %539
  %541 = vadd.xlane.f32.xlu0 %v516
  %v542 = vpop.xlane.xlu0 %541
  %543 = vadd.xlane.f32.xlu0 %v517
  %v544 = vpop.xlane.xlu0 %543
  %545 = vadd.xlane.f32.xlu0 %v518
  %v546 = vpop.xlane.xlu0 %545
  %547 = vadd.xlane.f32.xlu0 %v519
  %v548 = vpop.xlane.xlu0 %547
  %549 = vadd.xlane.f32.xlu0 %v520
  %v550 = vpop.xlane.xlu0 %549
  %551 = vadd.xlane.f32.xlu0 %v521
  %v552 = vpop.xlane.xlu0 %551
  %553 = vadd.xlane.f32.xlu0 %v522
  %v554 = vpop.xlane.xlu0 %553
  %555 = vadd.xlane.f32.xlu0 %v523
  %v556 = vpop.xlane.xlu0 %555
  %557 = vadd.xlane.f32.xlu0 %v524
  %v558 = vpop.xlane.xlu0 %557
  %559 = vadd.xlane.f32.xlu0 %v525
  %v560 = vpop.xlane.xlu0 %559
  %561 = vadd.xlane.f32.xlu0 %v526
  %v562 = vpop.xlane.xlu0 %561
  %563 = vadd.xlane.f32.xlu0 %v527
  %v564 = vpop.xlane.xlu0 %563
  %565 = vadd.xlane.f32.xlu0 %v528
  %v566 = vpop.xlane.xlu0 %565
  %567 = vadd.xlane.f32.xlu0 %v529
  %v568 = vpop.xlane.xlu0 %567
  %569 = vadd.xlane.f32.xlu0 %v530
  %v570 = vpop.xlane.xlu0 %569
  %571 = vadd.xlane.f32.xlu0 %v531
  %v572 = vpop.xlane.xlu0 %571
  %573 = vadd.xlane.f32.xlu0 %v532
  %v574 = vpop.xlane.xlu0 %573
  %575 = vadd.xlane.f32.xlu0 %v533
  %v576 = vpop.xlane.xlu0 %575
  %577 = vadd.xlane.f32.xlu0 %v534
  %v578 = vpop.xlane.xlu0 %577
  %579 = vadd.xlane.f32.xlu0 %v535
  %v580 = vpop.xlane.xlu0 %579
  %581 = vadd.xlane.f32.xlu0 %v536
  %v582 = vpop.xlane.xlu0 %581
  %583 = vadd.xlane.f32.xlu0 %v537
  %v584 = vpop.xlane.xlu0 %583
  %vm585 = vcmask 1045504
  %v586 = vsel %vm585, %v538, 0.0
  %587 = vadd.xlane.f32.xlu0 %v586
  %v588 = vpop.xlane.xlu0 %587
  %v589 = vsel %vm514, %v540, -inf
  %v590 = vsel %vm514, %v542, -inf
  %v591 = vsel %vm514, %v544, -inf
  %v592 = vsel %vm514, %v546, -inf
  %v593 = vsel %vm514, %v548, -inf
  %v594 = vsel %vm514, %v550, -inf
  %v595 = vsel %vm514, %v552, -inf
  %v596 = vsel %vm514, %v554, -inf
  %v597 = vsel %vm514, %v556, -inf
  %v598 = vsel %vm514, %v558, -inf
  %v599 = vsel %vm514, %v560, -inf
  %v600 = vsel %vm514, %v562, -inf
  %v601 = vsel %vm514, %v564, -inf
  %v602 = vsel %vm514, %v566, -inf
  %v603 = vsel %vm514, %v568, -inf
  %v604 = vsel %vm514, %v570, -inf
  %v605 = vsel %vm514, %v572, -inf
  %v606 = vsel %vm514, %v574, -inf
  %v607 = vsel %vm514, %v576, -inf
  %v608 = vsel %vm514, %v578, -inf
  %v609 = vsel %vm514, %v580, -inf
  %v610 = vsel %vm514, %v582, -inf
  %v611 = vsel %vm514, %v584, -inf
  %v612 = vsel %vm514, %v588, -inf
  %v613 = vsel %vm370, %v201, %v589
  %v614 = vsel %vm371, %v204, %v590
  %v615 = vsel %vm372, %v207, %v591
  %v616 = vsel %vm373, %v210, %v592
  %v617 = vsel %vm374, %v213, %v593
  %v618 = vsel %vm375, %v216, %v594
  %v619 = vsel %vm376, %v219, %v595
  %v620 = vsel %vm377, %v222, %v596
  %v621 = vsel %vm378, %v225, %v597
  %v622 = vsel %vm379, %v228, %v598
  %v623 = vsel %vm380, %v231, %v599
  %v624 = vsel %vm381, %v234, %v600
  %v625 = vsel %vm382, %v237, %v601
  %v626 = vsel %vm383, %v240, %v602
  %v627 = vsel %vm384, %v243, %v603
  %v628 = vsel %vm385, %v246, %v604
  %v629 = vsel %vm386, %v249, %v605
  %v630 = vsel %vm387, %v252, %v606
  %v631 = vsel %vm388, %v255, %v607
  %v632 = vsel %vm389, %v258, %v608
  %v633 = vsel %vm390, %v261, %v609
  %v634 = vsel %vm391, %v264, %v610
  %v635 = vsel %vm392, %v267, %v611
  %v636 = vsel %vm393, %v270, %v612
  %637 = vst [vmem:[%s3] sm:$0xff] %v613
  %638 = vst [vmem:[%s3 + $0x8] sm:$0xff] %v614
  %639 = vst [vmem:[%s3 + $0x10] sm:$0xff] %v615
  %640 = vst [vmem:[%s3 + $0x18] sm:$0xff] %v616
  %641 = vst [vmem:[%s3 + $0x20] sm:$0xff] %v617
  %642 = vst [vmem:[%s3 + $0x28] sm:$0xff] %v618
  %643 = vst [vmem:[%s3 + $0x30] sm:$0xff] %v619
  %644 = vst [vmem:[%s3 + $0x38] sm:$0xff] %v620
  %645 = vst [vmem:[%s3 + $0x40] sm:$0xff] %v621
  %646 = vst [vmem:[%s3 + $0x48] sm:$0xff] %v622
  %647 = vst [vmem:[%s3 + $0x50] sm:$0xff] %v623
  %648 = vst [vmem:[%s3 + $0x58] sm:$0xff] %v624
  %649 = vst [vmem:[%s3 + $0x60] sm:$0xff] %v625
  %650 = vst [vmem:[%s3 + $0x68] sm:$0xff] %v626
  %651 = vst [vmem:[%s3 + $0x70] sm:$0xff] %v627
  %652 = vst [vmem:[%s3 + $0x78] sm:$0xff] %v628
  %653 = vst [vmem:[%s3 + $0x80] sm:$0xff] %v629
  %654 = vst [vmem:[%s3 + $0x88] sm:$0xff] %v630
  %655 = vst [vmem:[%s3 + $0x90] sm:$0xff] %v631
  %656 = vst [vmem:[%s3 + $0x98] sm:$0xff] %v632
  %657 = vst [vmem:[%s3 + $0xa0] sm:$0xff] %v633
  %658 = vst [vmem:[%s3 + $0xa8] sm:$0xff] %v634
  %659 = vst [vmem:[%s3 + $0xb0] sm:$0xff] %v635
  %660 = vst [vmem:[%s3 + $0xb8] sm:$0x3f] %v636
  // Predicated region
  $region14: #{codebook_contrastive_head2.1} parent=0 // pred_check
    _
  $region15: #{codebook_contrastive_head2.1} parent=0 // pred_check_branch
    %662 = sbr.rel (0) target = $region17
  $region16: #{codebook_contrastive_head2.1} parent=0 // pred_region
    _
  $region17: #{codebook_contrastive_head2.1} parent=0 // pred_fallthru
    _
  // Predicated region
  $region18: #{codebook_contrastive_head2.1} parent=0 // pred_check
    _
  $region19: #{codebook_contrastive_head2.1} parent=0 // pred_check_branch
    %664 = sbr.rel (0) target = $region21
  $region20: #{codebook_contrastive_head2.1} parent=0 // pred_region
    _
  $region21: #{codebook_contrastive_head2.1} parent=0 // pred_fallthru
    _

</llo_original>
